<compile_context>
chip_gen: v7x
topology: tpu7x:2x2x1
jax: 0.10.0
libtpu: 0.0.40
codegen_flags: <defaults>
</compile_context>

<pallas_src>
import math
import functools

import jax
import jax.numpy as jnp
from jax.experimental import pallas as pl
from jax.experimental.pallas import tpu as pltpu


def kan2_kernel(x_ref, wm_ref, bm_ref, wb_ref, bb_ref, wf_ref, bias_ref,
                o_ref, act_ref, *, in_features, mul_basis, num_basis):
    F = in_features + mul_basis
    nbF = num_basis * F

    # --- in-kernel input transpose: (TN, in) -> (in, TN) via identity MXU dot ---
    # trans_b dot (contract both minor dims) is the standard q@k.T form and is
    # always supported; it removes the host-side XLA transpose HBM pass.
    ri = jax.lax.broadcasted_iota(jnp.int32, (in_features, in_features), 0)
    ci = jax.lax.broadcasted_iota(jnp.int32, (in_features, in_features), 1)
    eye = (ri == ci).astype(jnp.float32)
    xT = jax.lax.dot_general(
        eye, x_ref[...],
        dimension_numbers=(((1,), (1,)), ((), ())),
        preferred_element_type=jnp.float32)                      # (in, TN)

    # --- MultBasis: m_j = prod_i (x_i * Wm[j,i] + Bm[j,i]), unrolled product ---
    wm = wm_ref[...]                                             # (mul, in)
    bm = bm_ref[...]                                             # (mul, in)
    m = wm[:, 0:1] * xT[0:1, :] + bm[:, 0:1]                     # (mul, TN)
    for i in range(1, in_features):
        m = m * (wm[:, i:i + 1] * xT[i:i + 1, :] + bm[:, i:i + 1])

    # --- stash z = [x ; m] in the last F rows of act (overwritten by cos(z)) ---
    act_ref[nbF:nbF + in_features, :] = xT
    act_ref[nbF + in_features:nbF + F, :] = m

    # --- RBF basis: each (F, TN) block written exactly once into act ---
    # Row p = b*F + i:  u = z_i * Wb'[b,i] + Bb'[b,i]  with Wb', Bb' pre-scaled
    # by sqrt(beta) on the host, so basis = exp(-u*u).
    for b in range(num_basis):
        z = act_ref[nbF:nbF + F, :]                              # (F, TN)
        u = z * wb_ref[b * F:(b + 1) * F, :] + bb_ref[b * F:(b + 1) * F, :]
        act_ref[b * F:(b + 1) * F, :] = jnp.exp(-(u * u))

    # --- overwrite the z stash with cos(z): the base_fn branch rows ---
    act_ref[nbF:nbF + F, :] = jnp.cos(act_ref[nbF:nbF + F, :])

    # --- single fused MXU matmul: [Wspl | scale_base] @ [basis ; cos(z)] ---
    y = jnp.dot(wf_ref[...], act_ref[...],
                preferred_element_type=jnp.float32)              # (out, TN)
    o_ref[...] = (y + bias_ref[...]).astype(o_ref.dtype)         # lane-dense store


def _pick_tile(n, tile_n):
    """Batch tile: multiple of 128, big to amortize per-step overhead, but
    guaranteeing >= 2 grid steps when the batch allows (v7x has 2 TensorCores
    and the single 'parallel' batch axis is the only sharding dimension)."""
    n128 = pl.cdiv(max(n, 1), 128) * 128
    tile_n = max(128, (int(tile_n) // 128) * 128)
    tile_n = min(tile_n, n128)
    if n128 >= 256 and tile_n >= n128:          # grid would collapse to (1,)
        tile_n = max(128, ((n128 // 2) // 128) * 128)
    return tile_n


def kan_layer2_forward(x, params, *, num_basis, mul_basis, tile_n=2048):
    """x: (..., in_features) f32 -> (..., out_features) f32."""
    *lead, in_features = x.shape
    x2 = x.reshape(-1, in_features).astype(jnp.float32)
    n = x2.shape[0]
    out_features = params["W_fused"].shape[0]
    F = in_features + mul_basis

    tile_n = _pick_tile(n, tile_n)
    n_pad = pl.cdiv(n, tile_n) * tile_n

    x_in = x2
    if n_pad != n:
        x_in = jnp.pad(x2, ((0, n_pad - n), (0, 0)))   # zero-pad extra batch rows

    kernel = functools.partial(
        kan2_kernel, in_features=in_features,
        mul_basis=mul_basis, num_basis=num_basis)

    full = lambda arr: pl.BlockSpec(arr.shape, lambda i: (0,) * arr.ndim)

    outT = pl.pallas_call(
        kernel,
        out_shape=jax.ShapeDtypeStruct((out_features, n_pad), jnp.float32),
        grid_spec=pltpu.PrefetchScalarGridSpec(
            num_scalar_prefetch=0,
            grid=(n_pad // tile_n,),
            in_specs=[
                pl.BlockSpec((tile_n, in_features), lambda i: (i, 0)),   # natural x layout
                full(params["Wm"]), full(params["Bm"]),
                full(params["Wb_col"]), full(params["Bb_col"]),
                full(params["W_fused"]), full(params["bias_col"]),
            ],
            out_specs=pl.BlockSpec((out_features, tile_n), lambda i: (0, i)),
            scratch_shapes=[
                pltpu.VMEM((num_basis * F + F, tile_n), jnp.float32),    # act slab
            ],
        ),
        compiler_params=pltpu.CompilerParams(
            dimension_semantics=("parallel",),          # megacore-shard the batch
            vmem_limit_bytes=32 * 1024 * 1024),         # safe on v5e/v6e/v7x (~3 MiB used)
    )(x_in, params["Wm"], params["Bm"], params["Wb_col"], params["Bb_col"],
      params["W_fused"], params["bias_col"])

    # Kernel output is (out, N) to keep lane-dense unmasked stores; transpose
    # back on the host (in-kernel transpose to a 32-wide minor dim avoided for
    # lowering safety).
    out = jnp.transpose(outT)[:n]
    return out.reshape(*lead, out_features)


def make_params(key, in_features, out_features, num_basis, mul_basis):
    """Deterministic synthetic parameter init mirroring the module's shapes."""
    F = in_features + mul_basis
    k1, k2, k3, k4 = jax.random.split(key, 4)

    # MultBasis: weights zeros with row 0 = 1; bias ones with row 0 = 0.
    Wm = jnp.zeros((mul_basis, in_features), jnp.float32).at[0].set(1.0)
    Bm = jnp.ones((mul_basis, in_features), jnp.float32).at[0].set(0.0)

    # KANBasis(F, num_basis): kaiming-ish uniform weights, linspace bias.
    bound_wb = math.sqrt(3.0) / math.sqrt(F)
    Wb = jax.random.uniform(k1, (num_basis, F), jnp.float32, -bound_wb, bound_wb)
    bound_bb = (1.0 / math.sqrt(F)) / F
    Bb = jnp.tile(jnp.linspace(-bound_bb, bound_bb, num_basis,
                               dtype=jnp.float32)[:, None], (1, F))
    beta = float((num_basis / max(math.log2(num_basis), 1.0)) ** 2)

    # KANLayer spline weights (out, num_basis*F), bias (out,), scale_base (out, F).
    fan_in = num_basis * F
    bound_w = math.sqrt(3.0) * math.sqrt(2.0 / (1.0 + 5.0)) / math.sqrt(fan_in)
    Wspl = jax.random.uniform(k2, (out_features, fan_in), jnp.float32,
                              -bound_w, bound_w)
    bound_b = 1.0 / math.sqrt(fan_in)
    bias = jax.random.uniform(k3, (out_features,), jnp.float32, -bound_b, bound_b)
    bound_sb = math.sqrt(3.0) * math.sqrt(2.0 / (1.0 + 5.0)) / math.sqrt(F)
    Sb = jax.random.uniform(k4, (out_features, F), jnp.float32, -bound_sb, bound_sb)

    sqrt_beta = math.sqrt(beta)
    return {
        # raw parameters (used by the plain-JAX reference)
        "Wm": Wm, "Bm": Bm, "Wb": Wb, "Bb": Bb, "beta": beta,
        "Wspl": Wspl, "bias": bias, "Sb": Sb,
        # kernel-side prepped layouts:
        #   - beta folded into the RBF affine, flattened to (nb*F, 1) columns
        #     (flat order p = b*F + i matches Wspl's fan-in layout)
        #   - spline + cos-base weights fused along the contraction axis
        "Wb_col": (Wb * sqrt_beta).reshape(num_basis * F, 1),
        "Bb_col": (Bb * sqrt_beta).reshape(num_basis * F, 1),
        "W_fused": jnp.concatenate([Wspl, Sb], axis=1),   # (out, nb*F + F)
        "bias_col": bias[:, None],                        # (out, 1)
    }


def ref_forward(x, params, *, num_basis, mul_basis):
    """Plain-JAX reference mirroring the PyTorch forward (for sanity check)."""
    Wm, Bm = params["Wm"], params["Bm"]
    m = jnp.prod(x[:, None, :] * Wm[None] + Bm[None], axis=-1)
    z = jnp.concatenate([x, m], axis=-1)
    u = z[:, None, :] * params["Wb"][None] + params["Bb"][None]
    basis = jnp.exp(-params["beta"] * u * u)
    F = z.shape[-1]
    y = basis.reshape(x.shape[0], num_basis * F) @ params["Wspl"].T
    y = y + params["bias"][None, :]
    y = y + jnp.cos(z) @ params["Sb"].T
    return y


if __name__ == "__main__":
    in_features, out_features = 16, 32
    num_basis, mul_basis = 8, 8
    batch = 256   # tile picker -> tile_n=128, grid=(2,): exercises pipelining/megacore

    key = jax.random.PRNGKey(0)
    kx, kp = jax.random.split(key)
    x = jax.random.normal(kx, (batch, in_features), jnp.float32) * 0.5
    params = make_params(kp, in_features, out_features, num_basis, mul_basis)

    out = kan_layer2_forward(x, params, num_basis=num_basis, mul_basis=mul_basis)
    out = jax.block_until_ready(out)

    ref = ref_forward(x, params, num_basis=num_basis, mul_basis=mul_basis)
    assert out.shape == (batch, out_features)
    # Tolerance covers possible reduced-precision (bf16-pass) MXU behaviour of
    # f32 matmuls at default precision on both the kernel and the reference;
    # a genuine algorithmic mismatch would be O(0.1).
    assert jnp.allclose(out, ref, atol=1e-2, rtol=1e-2), "mismatch vs reference"

    print("KERNEL_OK")
</pallas_src>

<mosaic_0001>
module attributes {stable_mosaic.version = 11 : i64} {
  func.func @kan2_kernel(%arg0: i32, %arg1: memref<128x16xf32, #tpu.memory_space<vmem>>, %arg2: memref<8x16xf32, #tpu.memory_space<vmem>>, %arg3: memref<8x16xf32, #tpu.memory_space<vmem>>, %arg4: memref<192x1xf32, #tpu.memory_space<vmem>>, %arg5: memref<192x1xf32, #tpu.memory_space<vmem>>, %arg6: memref<32x216xf32, #tpu.memory_space<vmem>>, %arg7: memref<32x1xf32, #tpu.memory_space<vmem>>, %arg8: memref<32x128xf32, #tpu.memory_space<vmem>>, %arg9: memref<216x128xf32, #tpu.memory_space<vmem>>) attributes {dimension_semantics = [#tpu.dimension_semantics<parallel>], iteration_bounds = array<i64: 2>, scalar_prefetch = 0 : i64, scratch_operands = 1 : i64, tpu.core_type = #tpu.core_type<tc>, window_params = [{transform_indices = @transform_0, window_bounds = array<i64: 128, 16>}, {pipeline_mode = #tpu.pipeline_mode<synchronous>, transform_indices = @transform_1, window_bounds = array<i64: 8, 16>}, {pipeline_mode = #tpu.pipeline_mode<synchronous>, transform_indices = @transform_2, window_bounds = array<i64: 8, 16>}, {pipeline_mode = #tpu.pipeline_mode<synchronous>, transform_indices = @transform_3, window_bounds = array<i64: 192, 1>}, {pipeline_mode = #tpu.pipeline_mode<synchronous>, transform_indices = @transform_4, window_bounds = array<i64: 192, 1>}, {pipeline_mode = #tpu.pipeline_mode<synchronous>, transform_indices = @transform_5, window_bounds = array<i64: 32, 216>}, {pipeline_mode = #tpu.pipeline_mode<synchronous>, transform_indices = @transform_6, window_bounds = array<i64: 32, 1>}, {transform_indices = @transform_7, window_bounds = array<i64: 32, 128>}]} {
    %0 = tpu.iota {dimensions = array<i32: 0>} : vector<16x16xi32>
    %1 = tpu.iota {dimensions = array<i32: 1>} : vector<16x16xi32>
    %2 = arith.cmpi eq, %0, %1 : vector<16x16xi32>
    %3 = arith.extui %2 : vector<16x16xi1> to vector<16x16xi32>
    %4 = arith.sitofp %3 : vector<16x16xi32> to vector<16x16xf32>
    %c0 = arith.constant 0 : index
    %c0_0 = arith.constant 0 : index
    %5 = vector.load %arg1[%c0, %c0_0] : memref<128x16xf32, #tpu.memory_space<vmem>>, vector<128x16xf32>
    %cst = arith.constant dense<0.000000e+00> : vector<16x128xf32>
    %6 = tpu.matmul %4, %5, %cst {dimension_numbers = #tpu.dot_dimension_numbers<[1], [1], [0], [0], [0, 0, 1, 0], [], []>} : vector<16x16xf32>, vector<128x16xf32>, vector<16x128xf32> -> vector<16x128xf32>
    %c0_1 = arith.constant 0 : index
    %c0_2 = arith.constant 0 : index
    %7 = vector.load %arg2[%c0_1, %c0_2] : memref<8x16xf32, #tpu.memory_space<vmem>>, vector<8x16xf32>
    %c0_3 = arith.constant 0 : index
    %c0_4 = arith.constant 0 : index
    %8 = vector.load %arg3[%c0_3, %c0_4] : memref<8x16xf32, #tpu.memory_space<vmem>>, vector<8x16xf32>
    %9 = vector.extract_strided_slice %7 {offsets = [0, 0], sizes = [8, 1], strides = [1, 1]} : vector<8x16xf32> to vector<8x1xf32>
    %10 = vector.extract_strided_slice %6 {offsets = [0, 0], sizes = [1, 128], strides = [1, 1]} : vector<16x128xf32> to vector<1x128xf32>
    %11 = vector.broadcast %9 : vector<8x1xf32> to vector<8x128xf32>
    %12 = vector.broadcast %10 : vector<1x128xf32> to vector<8x128xf32>
    %13 = arith.mulf %11, %12 : vector<8x128xf32>
    %14 = vector.extract_strided_slice %8 {offsets = [0, 0], sizes = [8, 1], strides = [1, 1]} : vector<8x16xf32> to vector<8x1xf32>
    %15 = vector.broadcast %14 : vector<8x1xf32> to vector<8x128xf32>
    %16 = arith.addf %13, %15 : vector<8x128xf32>
    %17 = vector.extract_strided_slice %7 {offsets = [0, 1], sizes = [8, 1], strides = [1, 1]} : vector<8x16xf32> to vector<8x1xf32>
    %18 = vector.extract_strided_slice %6 {offsets = [1, 0], sizes = [1, 128], strides = [1, 1]} : vector<16x128xf32> to vector<1x128xf32>
    %19 = vector.broadcast %17 : vector<8x1xf32> to vector<8x128xf32>
    %20 = vector.broadcast %18 : vector<1x128xf32> to vector<8x128xf32>
    %21 = arith.mulf %19, %20 : vector<8x128xf32>
    %22 = vector.extract_strided_slice %8 {offsets = [0, 1], sizes = [8, 1], strides = [1, 1]} : vector<8x16xf32> to vector<8x1xf32>
    %23 = vector.broadcast %22 : vector<8x1xf32> to vector<8x128xf32>
    %24 = arith.addf %21, %23 : vector<8x128xf32>
    %25 = arith.mulf %16, %24 : vector<8x128xf32>
    %26 = vector.extract_strided_slice %7 {offsets = [0, 2], sizes = [8, 1], strides = [1, 1]} : vector<8x16xf32> to vector<8x1xf32>
    %27 = vector.extract_strided_slice %6 {offsets = [2, 0], sizes = [1, 128], strides = [1, 1]} : vector<16x128xf32> to vector<1x128xf32>
    %28 = vector.broadcast %26 : vector<8x1xf32> to vector<8x128xf32>
    %29 = vector.broadcast %27 : vector<1x128xf32> to vector<8x128xf32>
    %30 = arith.mulf %28, %29 : vector<8x128xf32>
    %31 = vector.extract_strided_slice %8 {offsets = [0, 2], sizes = [8, 1], strides = [1, 1]} : vector<8x16xf32> to vector<8x1xf32>
    %32 = vector.broadcast %31 : vector<8x1xf32> to vector<8x128xf32>
    %33 = arith.addf %30, %32 : vector<8x128xf32>
    %34 = arith.mulf %25, %33 : vector<8x128xf32>
    %35 = vector.extract_strided_slice %7 {offsets = [0, 3], sizes = [8, 1], strides = [1, 1]} : vector<8x16xf32> to vector<8x1xf32>
    %36 = vector.extract_strided_slice %6 {offsets = [3, 0], sizes = [1, 128], strides = [1, 1]} : vector<16x128xf32> to vector<1x128xf32>
    %37 = vector.broadcast %35 : vector<8x1xf32> to vector<8x128xf32>
    %38 = vector.broadcast %36 : vector<1x128xf32> to vector<8x128xf32>
    %39 = arith.mulf %37, %38 : vector<8x128xf32>
    %40 = vector.extract_strided_slice %8 {offsets = [0, 3], sizes = [8, 1], strides = [1, 1]} : vector<8x16xf32> to vector<8x1xf32>
    %41 = vector.broadcast %40 : vector<8x1xf32> to vector<8x128xf32>
    %42 = arith.addf %39, %41 : vector<8x128xf32>
    %43 = arith.mulf %34, %42 : vector<8x128xf32>
    %44 = vector.extract_strided_slice %7 {offsets = [0, 4], sizes = [8, 1], strides = [1, 1]} : vector<8x16xf32> to vector<8x1xf32>
    %45 = vector.extract_strided_slice %6 {offsets = [4, 0], sizes = [1, 128], strides = [1, 1]} : vector<16x128xf32> to vector<1x128xf32>
    %46 = vector.broadcast %44 : vector<8x1xf32> to vector<8x128xf32>
    %47 = vector.broadcast %45 : vector<1x128xf32> to vector<8x128xf32>
    %48 = arith.mulf %46, %47 : vector<8x128xf32>
    %49 = vector.extract_strided_slice %8 {offsets = [0, 4], sizes = [8, 1], strides = [1, 1]} : vector<8x16xf32> to vector<8x1xf32>
    %50 = vector.broadcast %49 : vector<8x1xf32> to vector<8x128xf32>
    %51 = arith.addf %48, %50 : vector<8x128xf32>
    %52 = arith.mulf %43, %51 : vector<8x128xf32>
    %53 = vector.extract_strided_slice %7 {offsets = [0, 5], sizes = [8, 1], strides = [1, 1]} : vector<8x16xf32> to vector<8x1xf32>
    %54 = vector.extract_strided_slice %6 {offsets = [5, 0], sizes = [1, 128], strides = [1, 1]} : vector<16x128xf32> to vector<1x128xf32>
    %55 = vector.broadcast %53 : vector<8x1xf32> to vector<8x128xf32>
    %56 = vector.broadcast %54 : vector<1x128xf32> to vector<8x128xf32>
    %57 = arith.mulf %55, %56 : vector<8x128xf32>
    %58 = vector.extract_strided_slice %8 {offsets = [0, 5], sizes = [8, 1], strides = [1, 1]} : vector<8x16xf32> to vector<8x1xf32>
    %59 = vector.broadcast %58 : vector<8x1xf32> to vector<8x128xf32>
    %60 = arith.addf %57, %59 : vector<8x128xf32>
    %61 = arith.mulf %52, %60 : vector<8x128xf32>
    %62 = vector.extract_strided_slice %7 {offsets = [0, 6], sizes = [8, 1], strides = [1, 1]} : vector<8x16xf32> to vector<8x1xf32>
    %63 = vector.extract_strided_slice %6 {offsets = [6, 0], sizes = [1, 128], strides = [1, 1]} : vector<16x128xf32> to vector<1x128xf32>
    %64 = vector.broadcast %62 : vector<8x1xf32> to vector<8x128xf32>
    %65 = vector.broadcast %63 : vector<1x128xf32> to vector<8x128xf32>
    %66 = arith.mulf %64, %65 : vector<8x128xf32>
    %67 = vector.extract_strided_slice %8 {offsets = [0, 6], sizes = [8, 1], strides = [1, 1]} : vector<8x16xf32> to vector<8x1xf32>
    %68 = vector.broadcast %67 : vector<8x1xf32> to vector<8x128xf32>
    %69 = arith.addf %66, %68 : vector<8x128xf32>
    %70 = arith.mulf %61, %69 : vector<8x128xf32>
    %71 = vector.extract_strided_slice %7 {offsets = [0, 7], sizes = [8, 1], strides = [1, 1]} : vector<8x16xf32> to vector<8x1xf32>
    %72 = vector.extract_strided_slice %6 {offsets = [7, 0], sizes = [1, 128], strides = [1, 1]} : vector<16x128xf32> to vector<1x128xf32>
    %73 = vector.broadcast %71 : vector<8x1xf32> to vector<8x128xf32>
    %74 = vector.broadcast %72 : vector<1x128xf32> to vector<8x128xf32>
    %75 = arith.mulf %73, %74 : vector<8x128xf32>
    %76 = vector.extract_strided_slice %8 {offsets = [0, 7], sizes = [8, 1], strides = [1, 1]} : vector<8x16xf32> to vector<8x1xf32>
    %77 = vector.broadcast %76 : vector<8x1xf32> to vector<8x128xf32>
    %78 = arith.addf %75, %77 : vector<8x128xf32>
    %79 = arith.mulf %70, %78 : vector<8x128xf32>
    %80 = vector.extract_strided_slice %7 {offsets = [0, 8], sizes = [8, 1], strides = [1, 1]} : vector<8x16xf32> to vector<8x1xf32>
    %81 = vector.extract_strided_slice %6 {offsets = [8, 0], sizes = [1, 128], strides = [1, 1]} : vector<16x128xf32> to vector<1x128xf32>
    %82 = vector.broadcast %80 : vector<8x1xf32> to vector<8x128xf32>
    %83 = vector.broadcast %81 : vector<1x128xf32> to vector<8x128xf32>
    %84 = arith.mulf %82, %83 : vector<8x128xf32>
    %85 = vector.extract_strided_slice %8 {offsets = [0, 8], sizes = [8, 1], strides = [1, 1]} : vector<8x16xf32> to vector<8x1xf32>
    %86 = vector.broadcast %85 : vector<8x1xf32> to vector<8x128xf32>
    %87 = arith.addf %84, %86 : vector<8x128xf32>
    %88 = arith.mulf %79, %87 : vector<8x128xf32>
    %89 = vector.extract_strided_slice %7 {offsets = [0, 9], sizes = [8, 1], strides = [1, 1]} : vector<8x16xf32> to vector<8x1xf32>
    %90 = vector.extract_strided_slice %6 {offsets = [9, 0], sizes = [1, 128], strides = [1, 1]} : vector<16x128xf32> to vector<1x128xf32>
    %91 = vector.broadcast %89 : vector<8x1xf32> to vector<8x128xf32>
    %92 = vector.broadcast %90 : vector<1x128xf32> to vector<8x128xf32>
    %93 = arith.mulf %91, %92 : vector<8x128xf32>
    %94 = vector.extract_strided_slice %8 {offsets = [0, 9], sizes = [8, 1], strides = [1, 1]} : vector<8x16xf32> to vector<8x1xf32>
    %95 = vector.broadcast %94 : vector<8x1xf32> to vector<8x128xf32>
    %96 = arith.addf %93, %95 : vector<8x128xf32>
    %97 = arith.mulf %88, %96 : vector<8x128xf32>
    %98 = vector.extract_strided_slice %7 {offsets = [0, 10], sizes = [8, 1], strides = [1, 1]} : vector<8x16xf32> to vector<8x1xf32>
    %99 = vector.extract_strided_slice %6 {offsets = [10, 0], sizes = [1, 128], strides = [1, 1]} : vector<16x128xf32> to vector<1x128xf32>
    %100 = vector.broadcast %98 : vector<8x1xf32> to vector<8x128xf32>
    %101 = vector.broadcast %99 : vector<1x128xf32> to vector<8x128xf32>
    %102 = arith.mulf %100, %101 : vector<8x128xf32>
    %103 = vector.extract_strided_slice %8 {offsets = [0, 10], sizes = [8, 1], strides = [1, 1]} : vector<8x16xf32> to vector<8x1xf32>
    %104 = vector.broadcast %103 : vector<8x1xf32> to vector<8x128xf32>
    %105 = arith.addf %102, %104 : vector<8x128xf32>
    %106 = arith.mulf %97, %105 : vector<8x128xf32>
    %107 = vector.extract_strided_slice %7 {offsets = [0, 11], sizes = [8, 1], strides = [1, 1]} : vector<8x16xf32> to vector<8x1xf32>
    %108 = vector.extract_strided_slice %6 {offsets = [11, 0], sizes = [1, 128], strides = [1, 1]} : vector<16x128xf32> to vector<1x128xf32>
    %109 = vector.broadcast %107 : vector<8x1xf32> to vector<8x128xf32>
    %110 = vector.broadcast %108 : vector<1x128xf32> to vector<8x128xf32>
    %111 = arith.mulf %109, %110 : vector<8x128xf32>
    %112 = vector.extract_strided_slice %8 {offsets = [0, 11], sizes = [8, 1], strides = [1, 1]} : vector<8x16xf32> to vector<8x1xf32>
    %113 = vector.broadcast %112 : vector<8x1xf32> to vector<8x128xf32>
    %114 = arith.addf %111, %113 : vector<8x128xf32>
    %115 = arith.mulf %106, %114 : vector<8x128xf32>
    %116 = vector.extract_strided_slice %7 {offsets = [0, 12], sizes = [8, 1], strides = [1, 1]} : vector<8x16xf32> to vector<8x1xf32>
    %117 = vector.extract_strided_slice %6 {offsets = [12, 0], sizes = [1, 128], strides = [1, 1]} : vector<16x128xf32> to vector<1x128xf32>
    %118 = vector.broadcast %116 : vector<8x1xf32> to vector<8x128xf32>
    %119 = vector.broadcast %117 : vector<1x128xf32> to vector<8x128xf32>
    %120 = arith.mulf %118, %119 : vector<8x128xf32>
    %121 = vector.extract_strided_slice %8 {offsets = [0, 12], sizes = [8, 1], strides = [1, 1]} : vector<8x16xf32> to vector<8x1xf32>
    %122 = vector.broadcast %121 : vector<8x1xf32> to vector<8x128xf32>
    %123 = arith.addf %120, %122 : vector<8x128xf32>
    %124 = arith.mulf %115, %123 : vector<8x128xf32>
    %125 = vector.extract_strided_slice %7 {offsets = [0, 13], sizes = [8, 1], strides = [1, 1]} : vector<8x16xf32> to vector<8x1xf32>
    %126 = vector.extract_strided_slice %6 {offsets = [13, 0], sizes = [1, 128], strides = [1, 1]} : vector<16x128xf32> to vector<1x128xf32>
    %127 = vector.broadcast %125 : vector<8x1xf32> to vector<8x128xf32>
    %128 = vector.broadcast %126 : vector<1x128xf32> to vector<8x128xf32>
    %129 = arith.mulf %127, %128 : vector<8x128xf32>
    %130 = vector.extract_strided_slice %8 {offsets = [0, 13], sizes = [8, 1], strides = [1, 1]} : vector<8x16xf32> to vector<8x1xf32>
    %131 = vector.broadcast %130 : vector<8x1xf32> to vector<8x128xf32>
    %132 = arith.addf %129, %131 : vector<8x128xf32>
    %133 = arith.mulf %124, %132 : vector<8x128xf32>
    %134 = vector.extract_strided_slice %7 {offsets = [0, 14], sizes = [8, 1], strides = [1, 1]} : vector<8x16xf32> to vector<8x1xf32>
    %135 = vector.extract_strided_slice %6 {offsets = [14, 0], sizes = [1, 128], strides = [1, 1]} : vector<16x128xf32> to vector<1x128xf32>
    %136 = vector.broadcast %134 : vector<8x1xf32> to vector<8x128xf32>
    %137 = vector.broadcast %135 : vector<1x128xf32> to vector<8x128xf32>
    %138 = arith.mulf %136, %137 : vector<8x128xf32>
    %139 = vector.extract_strided_slice %8 {offsets = [0, 14], sizes = [8, 1], strides = [1, 1]} : vector<8x16xf32> to vector<8x1xf32>
    %140 = vector.broadcast %139 : vector<8x1xf32> to vector<8x128xf32>
    %141 = arith.addf %138, %140 : vector<8x128xf32>
    %142 = arith.mulf %133, %141 : vector<8x128xf32>
    %143 = vector.extract_strided_slice %7 {offsets = [0, 15], sizes = [8, 1], strides = [1, 1]} : vector<8x16xf32> to vector<8x1xf32>
    %144 = vector.extract_strided_slice %6 {offsets = [15, 0], sizes = [1, 128], strides = [1, 1]} : vector<16x128xf32> to vector<1x128xf32>
    %145 = vector.broadcast %143 : vector<8x1xf32> to vector<8x128xf32>
    %146 = vector.broadcast %144 : vector<1x128xf32> to vector<8x128xf32>
    %147 = arith.mulf %145, %146 : vector<8x128xf32>
    %148 = vector.extract_strided_slice %8 {offsets = [0, 15], sizes = [8, 1], strides = [1, 1]} : vector<8x16xf32> to vector<8x1xf32>
    %149 = vector.broadcast %148 : vector<8x1xf32> to vector<8x128xf32>
    %150 = arith.addf %147, %149 : vector<8x128xf32>
    %151 = arith.mulf %142, %150 : vector<8x128xf32>
    %c192 = arith.constant 192 : index
    %c0_5 = arith.constant 0 : index
    %152 = vector.load %arg9[%c192, %c0_5] : memref<216x128xf32, #tpu.memory_space<vmem>>, vector<16x128xf32>
    tpu.vector_store %arg9[%c192, %c0_5], %6 {strides = array<i32>} : memref<216x128xf32, #tpu.memory_space<vmem>>, vector<16x128xf32>,
    %c208 = arith.constant 208 : index
    %c0_6 = arith.constant 0 : index
    %153 = vector.load %arg9[%c208, %c0_6] : memref<216x128xf32, #tpu.memory_space<vmem>>, vector<8x128xf32>
    tpu.vector_store %arg9[%c208, %c0_6], %151 {strides = array<i32>} : memref<216x128xf32, #tpu.memory_space<vmem>>, vector<8x128xf32>,
    %c192_7 = arith.constant 192 : index
    %c0_8 = arith.constant 0 : index
    %154 = vector.load %arg9[%c192_7, %c0_8] : memref<216x128xf32, #tpu.memory_space<vmem>>, vector<24x128xf32>
    %c0_9 = arith.constant 0 : index
    %c0_10 = arith.constant 0 : index
    %155 = vector.load %arg4[%c0_9, %c0_10] : memref<192x1xf32, #tpu.memory_space<vmem>>, vector<24x1xf32>
    %156 = vector.broadcast %155 : vector<24x1xf32> to vector<24x128xf32>
    %157 = arith.mulf %154, %156 : vector<24x128xf32>
    %c0_11 = arith.constant 0 : index
    %c0_12 = arith.constant 0 : index
    %158 = vector.load %arg5[%c0_11, %c0_12] : memref<192x1xf32, #tpu.memory_space<vmem>>, vector<24x1xf32>
    %159 = vector.broadcast %158 : vector<24x1xf32> to vector<24x128xf32>
    %160 = arith.addf %157, %159 : vector<24x128xf32>
    %161 = arith.mulf %160, %160 : vector<24x128xf32>
    %cst_13 = arith.constant 0.000000e+00 : f32
    %162 = vector.broadcast %cst_13 : f32 to vector<24x128xf32>
    %163 = arith.subf %162, %161 : vector<24x128xf32>
    %164 = math.exp %163 : vector<24x128xf32>
    %c0_14 = arith.constant 0 : index
    %c0_15 = arith.constant 0 : index
    %165 = vector.load %arg9[%c0_14, %c0_15] : memref<216x128xf32, #tpu.memory_space<vmem>>, vector<24x128xf32>
    tpu.vector_store %arg9[%c0_14, %c0_15], %164 {strides = array<i32>} : memref<216x128xf32, #tpu.memory_space<vmem>>, vector<24x128xf32>,
    %c192_16 = arith.constant 192 : index
    %c0_17 = arith.constant 0 : index
    %166 = vector.load %arg9[%c192_16, %c0_17] : memref<216x128xf32, #tpu.memory_space<vmem>>, vector<24x128xf32>
    %c24 = arith.constant 24 : index
    %c0_18 = arith.constant 0 : index
    %167 = vector.load %arg4[%c24, %c0_18] : memref<192x1xf32, #tpu.memory_space<vmem>>, vector<24x1xf32>
    %168 = vector.broadcast %167 : vector<24x1xf32> to vector<24x128xf32>
    %169 = arith.mulf %166, %168 : vector<24x128xf32>
    %c24_19 = arith.constant 24 : index
    %c0_20 = arith.constant 0 : index
    %170 = vector.load %arg5[%c24_19, %c0_20] : memref<192x1xf32, #tpu.memory_space<vmem>>, vector<24x1xf32>
    %171 = vector.broadcast %170 : vector<24x1xf32> to vector<24x128xf32>
    %172 = arith.addf %169, %171 : vector<24x128xf32>
    %173 = arith.mulf %172, %172 : vector<24x128xf32>
    %cst_21 = arith.constant 0.000000e+00 : f32
    %174 = vector.broadcast %cst_21 : f32 to vector<24x128xf32>
    %175 = arith.subf %174, %173 : vector<24x128xf32>
    %176 = math.exp %175 : vector<24x128xf32>
    %c24_22 = arith.constant 24 : index
    %c0_23 = arith.constant 0 : index
    %177 = vector.load %arg9[%c24_22, %c0_23] : memref<216x128xf32, #tpu.memory_space<vmem>>, vector<24x128xf32>
    tpu.vector_store %arg9[%c24_22, %c0_23], %176 {strides = array<i32>} : memref<216x128xf32, #tpu.memory_space<vmem>>, vector<24x128xf32>,
    %c192_24 = arith.constant 192 : index
    %c0_25 = arith.constant 0 : index
    %178 = vector.load %arg9[%c192_24, %c0_25] : memref<216x128xf32, #tpu.memory_space<vmem>>, vector<24x128xf32>
    %c48 = arith.constant 48 : index
    %c0_26 = arith.constant 0 : index
    %179 = vector.load %arg4[%c48, %c0_26] : memref<192x1xf32, #tpu.memory_space<vmem>>, vector<24x1xf32>
    %180 = vector.broadcast %179 : vector<24x1xf32> to vector<24x128xf32>
    %181 = arith.mulf %178, %180 : vector<24x128xf32>
    %c48_27 = arith.constant 48 : index
    %c0_28 = arith.constant 0 : index
    %182 = vector.load %arg5[%c48_27, %c0_28] : memref<192x1xf32, #tpu.memory_space<vmem>>, vector<24x1xf32>
    %183 = vector.broadcast %182 : vector<24x1xf32> to vector<24x128xf32>
    %184 = arith.addf %181, %183 : vector<24x128xf32>
    %185 = arith.mulf %184, %184 : vector<24x128xf32>
    %cst_29 = arith.constant 0.000000e+00 : f32
    %186 = vector.broadcast %cst_29 : f32 to vector<24x128xf32>
    %187 = arith.subf %186, %185 : vector<24x128xf32>
    %188 = math.exp %187 : vector<24x128xf32>
    %c48_30 = arith.constant 48 : index
    %c0_31 = arith.constant 0 : index
    %189 = vector.load %arg9[%c48_30, %c0_31] : memref<216x128xf32, #tpu.memory_space<vmem>>, vector<24x128xf32>
    tpu.vector_store %arg9[%c48_30, %c0_31], %188 {strides = array<i32>} : memref<216x128xf32, #tpu.memory_space<vmem>>, vector<24x128xf32>,
    %c192_32 = arith.constant 192 : index
    %c0_33 = arith.constant 0 : index
    %190 = vector.load %arg9[%c192_32, %c0_33] : memref<216x128xf32, #tpu.memory_space<vmem>>, vector<24x128xf32>
    %c72 = arith.constant 72 : index
    %c0_34 = arith.constant 0 : index
    %191 = vector.load %arg4[%c72, %c0_34] : memref<192x1xf32, #tpu.memory_space<vmem>>, vector<24x1xf32>
    %192 = vector.broadcast %191 : vector<24x1xf32> to vector<24x128xf32>
    %193 = arith.mulf %190, %192 : vector<24x128xf32>
    %c72_35 = arith.constant 72 : index
    %c0_36 = arith.constant 0 : index
    %194 = vector.load %arg5[%c72_35, %c0_36] : memref<192x1xf32, #tpu.memory_space<vmem>>, vector<24x1xf32>
    %195 = vector.broadcast %194 : vector<24x1xf32> to vector<24x128xf32>
    %196 = arith.addf %193, %195 : vector<24x128xf32>
    %197 = arith.mulf %196, %196 : vector<24x128xf32>
    %cst_37 = arith.constant 0.000000e+00 : f32
    %198 = vector.broadcast %cst_37 : f32 to vector<24x128xf32>
    %199 = arith.subf %198, %197 : vector<24x128xf32>
    %200 = math.exp %199 : vector<24x128xf32>
    %c72_38 = arith.constant 72 : index
    %c0_39 = arith.constant 0 : index
    %201 = vector.load %arg9[%c72_38, %c0_39] : memref<216x128xf32, #tpu.memory_space<vmem>>, vector<24x128xf32>
    tpu.vector_store %arg9[%c72_38, %c0_39], %200 {strides = array<i32>} : memref<216x128xf32, #tpu.memory_space<vmem>>, vector<24x128xf32>,
    %c192_40 = arith.constant 192 : index
    %c0_41 = arith.constant 0 : index
    %202 = vector.load %arg9[%c192_40, %c0_41] : memref<216x128xf32, #tpu.memory_space<vmem>>, vector<24x128xf32>
    %c96 = arith.constant 96 : index
    %c0_42 = arith.constant 0 : index
    %203 = vector.load %arg4[%c96, %c0_42] : memref<192x1xf32, #tpu.memory_space<vmem>>, vector<24x1xf32>
    %204 = vector.broadcast %203 : vector<24x1xf32> to vector<24x128xf32>
    %205 = arith.mulf %202, %204 : vector<24x128xf32>
    %c96_43 = arith.constant 96 : index
    %c0_44 = arith.constant 0 : index
    %206 = vector.load %arg5[%c96_43, %c0_44] : memref<192x1xf32, #tpu.memory_space<vmem>>, vector<24x1xf32>
    %207 = vector.broadcast %206 : vector<24x1xf32> to vector<24x128xf32>
    %208 = arith.addf %205, %207 : vector<24x128xf32>
    %209 = arith.mulf %208, %208 : vector<24x128xf32>
    %cst_45 = arith.constant 0.000000e+00 : f32
    %210 = vector.broadcast %cst_45 : f32 to vector<24x128xf32>
    %211 = arith.subf %210, %209 : vector<24x128xf32>
    %212 = math.exp %211 : vector<24x128xf32>
    %c96_46 = arith.constant 96 : index
    %c0_47 = arith.constant 0 : index
    %213 = vector.load %arg9[%c96_46, %c0_47] : memref<216x128xf32, #tpu.memory_space<vmem>>, vector<24x128xf32>
    tpu.vector_store %arg9[%c96_46, %c0_47], %212 {strides = array<i32>} : memref<216x128xf32, #tpu.memory_space<vmem>>, vector<24x128xf32>,
    %c192_48 = arith.constant 192 : index
    %c0_49 = arith.constant 0 : index
    %214 = vector.load %arg9[%c192_48, %c0_49] : memref<216x128xf32, #tpu.memory_space<vmem>>, vector<24x128xf32>
    %c120 = arith.constant 120 : index
    %c0_50 = arith.constant 0 : index
    %215 = vector.load %arg4[%c120, %c0_50] : memref<192x1xf32, #tpu.memory_space<vmem>>, vector<24x1xf32>
    %216 = vector.broadcast %215 : vector<24x1xf32> to vector<24x128xf32>
    %217 = arith.mulf %214, %216 : vector<24x128xf32>
    %c120_51 = arith.constant 120 : index
    %c0_52 = arith.constant 0 : index
    %218 = vector.load %arg5[%c120_51, %c0_52] : memref<192x1xf32, #tpu.memory_space<vmem>>, vector<24x1xf32>
    %219 = vector.broadcast %218 : vector<24x1xf32> to vector<24x128xf32>
    %220 = arith.addf %217, %219 : vector<24x128xf32>
    %221 = arith.mulf %220, %220 : vector<24x128xf32>
    %cst_53 = arith.constant 0.000000e+00 : f32
    %222 = vector.broadcast %cst_53 : f32 to vector<24x128xf32>
    %223 = arith.subf %222, %221 : vector<24x128xf32>
    %224 = math.exp %223 : vector<24x128xf32>
    %c120_54 = arith.constant 120 : index
    %c0_55 = arith.constant 0 : index
    %225 = vector.load %arg9[%c120_54, %c0_55] : memref<216x128xf32, #tpu.memory_space<vmem>>, vector<24x128xf32>
    tpu.vector_store %arg9[%c120_54, %c0_55], %224 {strides = array<i32>} : memref<216x128xf32, #tpu.memory_space<vmem>>, vector<24x128xf32>,
    %c192_56 = arith.constant 192 : index
    %c0_57 = arith.constant 0 : index
    %226 = vector.load %arg9[%c192_56, %c0_57] : memref<216x128xf32, #tpu.memory_space<vmem>>, vector<24x128xf32>
    %c144 = arith.constant 144 : index
    %c0_58 = arith.constant 0 : index
    %227 = vector.load %arg4[%c144, %c0_58] : memref<192x1xf32, #tpu.memory_space<vmem>>, vector<24x1xf32>
    %228 = vector.broadcast %227 : vector<24x1xf32> to vector<24x128xf32>
    %229 = arith.mulf %226, %228 : vector<24x128xf32>
    %c144_59 = arith.constant 144 : index
    %c0_60 = arith.constant 0 : index
    %230 = vector.load %arg5[%c144_59, %c0_60] : memref<192x1xf32, #tpu.memory_space<vmem>>, vector<24x1xf32>
    %231 = vector.broadcast %230 : vector<24x1xf32> to vector<24x128xf32>
    %232 = arith.addf %229, %231 : vector<24x128xf32>
    %233 = arith.mulf %232, %232 : vector<24x128xf32>
    %cst_61 = arith.constant 0.000000e+00 : f32
    %234 = vector.broadcast %cst_61 : f32 to vector<24x128xf32>
    %235 = arith.subf %234, %233 : vector<24x128xf32>
    %236 = math.exp %235 : vector<24x128xf32>
    %c144_62 = arith.constant 144 : index
    %c0_63 = arith.constant 0 : index
    %237 = vector.load %arg9[%c144_62, %c0_63] : memref<216x128xf32, #tpu.memory_space<vmem>>, vector<24x128xf32>
    tpu.vector_store %arg9[%c144_62, %c0_63], %236 {strides = array<i32>} : memref<216x128xf32, #tpu.memory_space<vmem>>, vector<24x128xf32>,
    %c192_64 = arith.constant 192 : index
    %c0_65 = arith.constant 0 : index
    %238 = vector.load %arg9[%c192_64, %c0_65] : memref<216x128xf32, #tpu.memory_space<vmem>>, vector<24x128xf32>
    %c168 = arith.constant 168 : index
    %c0_66 = arith.constant 0 : index
    %239 = vector.load %arg4[%c168, %c0_66] : memref<192x1xf32, #tpu.memory_space<vmem>>, vector<24x1xf32>
    %240 = vector.broadcast %239 : vector<24x1xf32> to vector<24x128xf32>
    %241 = arith.mulf %238, %240 : vector<24x128xf32>
    %c168_67 = arith.constant 168 : index
    %c0_68 = arith.constant 0 : index
    %242 = vector.load %arg5[%c168_67, %c0_68] : memref<192x1xf32, #tpu.memory_space<vmem>>, vector<24x1xf32>
    %243 = vector.broadcast %242 : vector<24x1xf32> to vector<24x128xf32>
    %244 = arith.addf %241, %243 : vector<24x128xf32>
    %245 = arith.mulf %244, %244 : vector<24x128xf32>
    %cst_69 = arith.constant 0.000000e+00 : f32
    %246 = vector.broadcast %cst_69 : f32 to vector<24x128xf32>
    %247 = arith.subf %246, %245 : vector<24x128xf32>
    %248 = math.exp %247 : vector<24x128xf32>
    %c168_70 = arith.constant 168 : index
    %c0_71 = arith.constant 0 : index
    %249 = vector.load %arg9[%c168_70, %c0_71] : memref<216x128xf32, #tpu.memory_space<vmem>>, vector<24x128xf32>
    tpu.vector_store %arg9[%c168_70, %c0_71], %248 {strides = array<i32>} : memref<216x128xf32, #tpu.memory_space<vmem>>, vector<24x128xf32>,
    %c192_72 = arith.constant 192 : index
    %c0_73 = arith.constant 0 : index
    %250 = vector.load %arg9[%c192_72, %c0_73] : memref<216x128xf32, #tpu.memory_space<vmem>>, vector<24x128xf32>
    %251 = math.cos %250 : vector<24x128xf32>
    %c192_74 = arith.constant 192 : index
    %c0_75 = arith.constant 0 : index
    %252 = vector.load %arg9[%c192_74, %c0_75] : memref<216x128xf32, #tpu.memory_space<vmem>>, vector<24x128xf32>
    tpu.vector_store %arg9[%c192_74, %c0_75], %251 {strides = array<i32>} : memref<216x128xf32, #tpu.memory_space<vmem>>, vector<24x128xf32>,
    %c0_76 = arith.constant 0 : index
    %c0_77 = arith.constant 0 : index
    %253 = vector.load %arg6[%c0_76, %c0_77] : memref<32x216xf32, #tpu.memory_space<vmem>>, vector<32x216xf32>
    %c0_78 = arith.constant 0 : index
    %c0_79 = arith.constant 0 : index
    %254 = vector.load %arg9[%c0_78, %c0_79] : memref<216x128xf32, #tpu.memory_space<vmem>>, vector<216x128xf32>
    %cst_80 = arith.constant dense<0.000000e+00> : vector<32x128xf32>
    %255 = tpu.matmul %253, %254, %cst_80 {dimension_numbers = #tpu.dot_dimension_numbers<[1], [0], [0], [1], [0, 0, 1, 1], [], []>} : vector<32x216xf32>, vector<216x128xf32>, vector<32x128xf32> -> vector<32x128xf32>
    %c0_81 = arith.constant 0 : index
    %c0_82 = arith.constant 0 : index
    %256 = vector.load %arg7[%c0_81, %c0_82] : memref<32x1xf32, #tpu.memory_space<vmem>>, vector<32x1xf32>
    %257 = vector.broadcast %256 : vector<32x1xf32> to vector<32x128xf32>
    %258 = arith.addf %255, %257 : vector<32x128xf32>
    %c0_83 = arith.constant 0 : index
    %c0_84 = arith.constant 0 : index
    %259 = vector.load %arg8[%c0_83, %c0_84] : memref<32x128xf32, #tpu.memory_space<vmem>>, vector<32x128xf32>
    tpu.vector_store %arg8[%c0_83, %c0_84], %258 {strides = array<i32>} : memref<32x128xf32, #tpu.memory_space<vmem>>, vector<32x128xf32>,
    return
  }
  func.func @transform_0(%arg0: i32) -> (i32, i32) {
    %c0_i32 = arith.constant 0 : i32
    %c0_i32_0 = arith.constant 0 : i32
    return %arg0, %c0_i32 : i32, i32
  }
  func.func @transform_1(%arg0: i32) -> (i32, i32) {
    %c0_i32 = arith.constant 0 : i32
    %c0_i32_0 = arith.constant 0 : i32
    %c0_i32_1 = arith.constant 0 : i32
    return %c0_i32, %c0_i32_0 : i32, i32
  }
  func.func @transform_2(%arg0: i32) -> (i32, i32) {
    %c0_i32 = arith.constant 0 : i32
    %c0_i32_0 = arith.constant 0 : i32
    %c0_i32_1 = arith.constant 0 : i32
    return %c0_i32, %c0_i32_0 : i32, i32
  }
  func.func @transform_3(%arg0: i32) -> (i32, i32) {
    %c0_i32 = arith.constant 0 : i32
    %c0_i32_0 = arith.constant 0 : i32
    %c0_i32_1 = arith.constant 0 : i32
    return %c0_i32, %c0_i32_0 : i32, i32
  }
  func.func @transform_4(%arg0: i32) -> (i32, i32) {
    %c0_i32 = arith.constant 0 : i32
    %c0_i32_0 = arith.constant 0 : i32
    %c0_i32_1 = arith.constant 0 : i32
    return %c0_i32, %c0_i32_0 : i32, i32
  }
  func.func @transform_5(%arg0: i32) -> (i32, i32) {
    %c0_i32 = arith.constant 0 : i32
    %c0_i32_0 = arith.constant 0 : i32
    %c0_i32_1 = arith.constant 0 : i32
    return %c0_i32, %c0_i32_0 : i32, i32
  }
  func.func @transform_6(%arg0: i32) -> (i32, i32) {
    %c0_i32 = arith.constant 0 : i32
    %c0_i32_0 = arith.constant 0 : i32
    %c0_i32_1 = arith.constant 0 : i32
    return %c0_i32, %c0_i32_0 : i32, i32
  }
  func.func @transform_7(%arg0: i32) -> (i32, i32) {
    %c0_i32 = arith.constant 0 : i32
    %c0_i32_0 = arith.constant 0 : i32
    return %c0_i32, %arg0 : i32, i32
  }
}

</mosaic_0001>

<llo_original>
// kernel: tpu_custom_call.1
$region0: #{tpu_custom_call.1}
  #allocation0 [shape = 'u32[]', space=smem, size = 0x4, offset = 0x4, fixed_abs, tag = 'smem constant byte address 0x4 - core index']
  #allocation1 [shape = 'u32[144,128]{1,0:T(1,128)}', space=vmem, size = 0x12000, scoped, tag = 'internal scratch']
  #allocation2 [shape = 'f32[216,128]{1,0:T(8,128)}', space=vmem, size = 0x1b000, scoped, tag = 'scratch operand']
  %s0 = inlined_call_operand.vmem [shape: f32[256,16], index: 0, kind: input, shape index: {}]
  %s1 = inlined_call_operand.vmem [shape: f32[8,16], index: 1, kind: input, shape index: {}]
  %s2 = inlined_call_operand.vmem [shape: f32[8,16], index: 2, kind: input, shape index: {}]
  %s3 = inlined_call_operand.vmem [shape: f32[192,1], index: 3, kind: input, shape index: {}]
  %s4 = inlined_call_operand.vmem [shape: f32[192,1], index: 4, kind: input, shape index: {}]
  %s5 = inlined_call_operand.vmem [shape: f32[32,216], index: 5, kind: input, shape index: {}]
  %s6 = inlined_call_operand.vmem [shape: f32[32,1], index: 6, kind: input, shape index: {}]
  %s7 = inlined_call_operand.hbm [shape: f32[32,256], index: 7, kind: output, shape index: {}]
  %s8 = sld [smem:[#allocation0]]
  $region61: #{tpu_custom_call.1} parent=0
    _
  %s10 = ssub.s32 1, %s8
  %s11 = scalar_select 0, %s10, %s8
  $region1: #{tpu_custom_call.1} parent=0
    #allocation3 [shape = 'u8[32768]{0}', space=vmem, size = 0x8000, scoped, tag = 'output window, operand 0']
    #allocation4 [shape = 's32[2]{0}', space=sflag, size = 0x8, scoped, tag = 'scoped memory for tpu_custom_call.1']
    %12 = vsyncpa [#allocation4], 0
    %s13 = scalar_lea.sflag [#allocation4], 1
    %14 = vsyncpa %s13, 0
    loop: start=0, step=1, limit=4
    $region2: #{tpu_custom_call.1} parent=1 // loop_pre_header
      _
    $region3: #{tpu_custom_call.1} parent=1 // loop_header
      %s16 = sphi 0, %s20
      %p17 = scmp.ge.s32.totalorder %s16, 4
      %s26 = sphi 0, %s28
      %s29 = sphi 0, %s26
      %s30 = sphi 0, %s29
      %s46 = sphi 0, %s30
      %s50 = sphi 0, %s50
      %s52 = sphi 0, %s50
      %s53 = sphi 0, %s52
      %s67 = sphi 0, %s53
      %s71 = sphi 0, %s71
      %s73 = sphi 0, %s71
      %s74 = sphi 0, %s73
      %s88 = sphi 0, %s74
      %s92 = sphi 0, %s92
      %s94 = sphi 0, %s92
      %s95 = sphi 0, %s94
      %s109 = sphi 0, %s95
      %s113 = sphi 0, %s113
      %s115 = sphi 0, %s113
      %s116 = sphi 0, %s115
      %s130 = sphi 0, %s116
      %s134 = sphi 0, %s134
      %s136 = sphi 0, %s134
      %s137 = sphi 0, %s136
      %s151 = sphi 0, %s137
      %s155 = sphi 0, %s155
      %s157 = sphi 0, %s155
      %s158 = sphi 0, %s157
      %s172 = sphi 0, %s158
      %s178 = sphi 0, %s180
      %s181 = sphi 0, %s178
      %s182 = sphi 0, %s181
      %s198 = sphi 0, %s182
    $region4: #{tpu_custom_call.1} parent=1 // loop_header_branch
      %19 = sbr.rel (%p17) target = $region8
    $region5: #{tpu_custom_call.1} parent=1 // loop_body
      %s21 = ssub.s32 %s16, 1
      %s22 = ssub.s32 %s16, 2
      %s23 = sadd.s32 %s16, 1
      %s24 = ssub.s32 %s16, %s23
      %p25 = scmp.eq.s32.totalorder %s24, 0
      %s27 = sadd.s32 %s26, 1
      %s28 = scalar_select %p25, %s26, %s27
      %p31 = pneg %p25
      %p32 = scmp.eq.s32.totalorder %s16, 1
      %p33 = por %p31, %p32
      %p34 = scmp.ne.s32.totalorder %s26, %s29
      %p35 = scmp.eq.s32.totalorder %s16, 0
      %p36 = por %p34, %p35
      %p37 = scmp.ne.s32.totalorder %s26, %s29
      %p38 = scmp.eq.s32.totalorder %s21, 1
      %p39 = por %p37, %p38
      %p40 = scmp.ne.s32.totalorder %s29, %s30
      %p41 = scmp.eq.s32.totalorder %s21, 0
      %p42 = por %p40, %p41
      %p43 = scmp.ne.s32.totalorder %s29, %s30
      %p44 = scmp.eq.s32.totalorder %s22, 1
      %p45 = por %p43, %p44
      %p47 = scmp.ne.s32.totalorder %s30, %s46
      %p48 = scmp.eq.s32.totalorder %s22, 0
      %p49 = por %p47, %p48
      %s51 = sadd.s32 %s50, 1
      %p54 = scmp.eq.s32.totalorder %s16, 1
      %p55 = scmp.ne.s32.totalorder %s50, %s52
      %p56 = scmp.eq.s32.totalorder %s16, 0
      %p57 = por %p55, %p56
      %p58 = scmp.ne.s32.totalorder %s50, %s52
      %p59 = scmp.eq.s32.totalorder %s21, 1
      %p60 = por %p58, %p59
      %p61 = scmp.ne.s32.totalorder %s52, %s53
      %p62 = scmp.eq.s32.totalorder %s21, 0
      %p63 = por %p61, %p62
      %p64 = scmp.ne.s32.totalorder %s52, %s53
      %p65 = scmp.eq.s32.totalorder %s22, 1
      %p66 = por %p64, %p65
      %p68 = scmp.ne.s32.totalorder %s53, %s67
      %p69 = scmp.eq.s32.totalorder %s22, 0
      %p70 = por %p68, %p69
      %s72 = sadd.s32 %s71, 1
      %p75 = scmp.eq.s32.totalorder %s16, 1
      %p76 = scmp.ne.s32.totalorder %s71, %s73
      %p77 = scmp.eq.s32.totalorder %s16, 0
      %p78 = por %p76, %p77
      %p79 = scmp.ne.s32.totalorder %s71, %s73
      %p80 = scmp.eq.s32.totalorder %s21, 1
      %p81 = por %p79, %p80
      %p82 = scmp.ne.s32.totalorder %s73, %s74
      %p83 = scmp.eq.s32.totalorder %s21, 0
      %p84 = por %p82, %p83
      %p85 = scmp.ne.s32.totalorder %s73, %s74
      %p86 = scmp.eq.s32.totalorder %s22, 1
      %p87 = por %p85, %p86
      %p89 = scmp.ne.s32.totalorder %s74, %s88
      %p90 = scmp.eq.s32.totalorder %s22, 0
      %p91 = por %p89, %p90
      %s93 = sadd.s32 %s92, 1
      %p96 = scmp.eq.s32.totalorder %s16, 1
      %p97 = scmp.ne.s32.totalorder %s92, %s94
      %p98 = scmp.eq.s32.totalorder %s16, 0
      %p99 = por %p97, %p98
      %p100 = scmp.ne.s32.totalorder %s92, %s94
      %p101 = scmp.eq.s32.totalorder %s21, 1
      %p102 = por %p100, %p101
      %p103 = scmp.ne.s32.totalorder %s94, %s95
      %p104 = scmp.eq.s32.totalorder %s21, 0
      %p105 = por %p103, %p104
      %p106 = scmp.ne.s32.totalorder %s94, %s95
      %p107 = scmp.eq.s32.totalorder %s22, 1
      %p108 = por %p106, %p107
      %p110 = scmp.ne.s32.totalorder %s95, %s109
      %p111 = scmp.eq.s32.totalorder %s22, 0
      %p112 = por %p110, %p111
      %s114 = sadd.s32 %s113, 1
      %p117 = scmp.eq.s32.totalorder %s16, 1
      %p118 = scmp.ne.s32.totalorder %s113, %s115
      %p119 = scmp.eq.s32.totalorder %s16, 0
      %p120 = por %p118, %p119
      %p121 = scmp.ne.s32.totalorder %s113, %s115
      %p122 = scmp.eq.s32.totalorder %s21, 1
      %p123 = por %p121, %p122
      %p124 = scmp.ne.s32.totalorder %s115, %s116
      %p125 = scmp.eq.s32.totalorder %s21, 0
      %p126 = por %p124, %p125
      %p127 = scmp.ne.s32.totalorder %s115, %s116
      %p128 = scmp.eq.s32.totalorder %s22, 1
      %p129 = por %p127, %p128
      %p131 = scmp.ne.s32.totalorder %s116, %s130
      %p132 = scmp.eq.s32.totalorder %s22, 0
      %p133 = por %p131, %p132
      %s135 = sadd.s32 %s134, 1
      %p138 = scmp.eq.s32.totalorder %s16, 1
      %p139 = scmp.ne.s32.totalorder %s134, %s136
      %p140 = scmp.eq.s32.totalorder %s16, 0
      %p141 = por %p139, %p140
      %p142 = scmp.ne.s32.totalorder %s134, %s136
      %p143 = scmp.eq.s32.totalorder %s21, 1
      %p144 = por %p142, %p143
      %p145 = scmp.ne.s32.totalorder %s136, %s137
      %p146 = scmp.eq.s32.totalorder %s21, 0
      %p147 = por %p145, %p146
      %p148 = scmp.ne.s32.totalorder %s136, %s137
      %p149 = scmp.eq.s32.totalorder %s22, 1
      %p150 = por %p148, %p149
      %p152 = scmp.ne.s32.totalorder %s137, %s151
      %p153 = scmp.eq.s32.totalorder %s22, 0
      %p154 = por %p152, %p153
      %s156 = sadd.s32 %s155, 1
      %p159 = scmp.eq.s32.totalorder %s16, 1
      %p160 = scmp.ne.s32.totalorder %s155, %s157
      %p161 = scmp.eq.s32.totalorder %s16, 0
      %p162 = por %p160, %p161
      %p163 = scmp.ne.s32.totalorder %s155, %s157
      %p164 = scmp.eq.s32.totalorder %s21, 1
      %p165 = por %p163, %p164
      %p166 = scmp.ne.s32.totalorder %s157, %s158
      %p167 = scmp.eq.s32.totalorder %s21, 0
      %p168 = por %p166, %p167
      %p169 = scmp.ne.s32.totalorder %s157, %s158
      %p170 = scmp.eq.s32.totalorder %s22, 1
      %p171 = por %p169, %p170
      %p173 = scmp.ne.s32.totalorder %s158, %s172
      %p174 = scmp.eq.s32.totalorder %s22, 0
      %p175 = por %p173, %p174
      %s176 = ssub.s32 %s16, %s23
      %p177 = scmp.eq.s32.totalorder %s176, 0
      %s179 = sadd.s32 %s178, 1
      %s180 = scalar_select %p177, %s178, %s179
      %p183 = pneg %p177
      %p184 = scmp.eq.s32.totalorder %s16, 1
      %p185 = por %p183, %p184
      %p186 = scmp.ne.s32.totalorder %s178, %s181
      %p187 = scmp.eq.s32.totalorder %s16, 0
      %p188 = por %p186, %p187
      %p189 = scmp.ne.s32.totalorder %s178, %s181
      %p190 = scmp.eq.s32.totalorder %s21, 1
      %p191 = por %p189, %p190
      %p192 = scmp.ne.s32.totalorder %s181, %s182
      %p193 = scmp.eq.s32.totalorder %s21, 0
      %p194 = por %p192, %p193
      %p195 = scmp.ne.s32.totalorder %s181, %s182
      %p196 = scmp.eq.s32.totalorder %s22, 1
      %p197 = por %p195, %p196
      %p199 = scmp.ne.s32.totalorder %s182, %s198
      %p200 = scmp.eq.s32.totalorder %s22, 0
      %p201 = por %p199, %p200
      %p202 = scmp.le.s32.totalorder 1, %s16
      %p203 = scmp.lt.s32.totalorder %s16, 3
      %p204 = pnand %p202, %p203
      %p205 = pneg %p204
      // Predicated region
      $region9: #{tpu_custom_call.1} parent=5 // pred_check
        _
      $region10: #{tpu_custom_call.1} parent=5 // pred_check_branch
        %207 = sbr.rel (%p204) target = $region12
      $region11: #{tpu_custom_call.1} parent=5 // pred_region
        %s208 = ssub.s32 %s16, 1
        // Predicated region
        $region13: #{tpu_custom_call.1} parent=11 // pred_check
          %p209 = pneg %p63
        $region14: #{tpu_custom_call.1} parent=11 // pred_check_branch
          %211 = sbr.rel (%p209) target = $region16
        $region15: #{tpu_custom_call.1} parent=11 // pred_region
          _
        $region16: #{tpu_custom_call.1} parent=11 // pred_fallthru
          _
        // Predicated region
        $region17: #{tpu_custom_call.1} parent=11 // pred_check
          %p212 = pneg %p84
        $region18: #{tpu_custom_call.1} parent=11 // pred_check_branch
          %214 = sbr.rel (%p212) target = $region20
        $region19: #{tpu_custom_call.1} parent=11 // pred_region
          _
        $region20: #{tpu_custom_call.1} parent=11 // pred_fallthru
          _
        // Predicated region
        $region21: #{tpu_custom_call.1} parent=11 // pred_check
          %p215 = pneg %p105
        $region22: #{tpu_custom_call.1} parent=11 // pred_check_branch
          %217 = sbr.rel (%p215) target = $region24
        $region23: #{tpu_custom_call.1} parent=11 // pred_region
          _
        $region24: #{tpu_custom_call.1} parent=11 // pred_fallthru
          _
        // Predicated region
        $region25: #{tpu_custom_call.1} parent=11 // pred_check
          %p218 = pneg %p126
        $region26: #{tpu_custom_call.1} parent=11 // pred_check_branch
          %220 = sbr.rel (%p218) target = $region28
        $region27: #{tpu_custom_call.1} parent=11 // pred_region
          _
        $region28: #{tpu_custom_call.1} parent=11 // pred_fallthru
          _
        // Predicated region
        $region29: #{tpu_custom_call.1} parent=11 // pred_check
          %p221 = pneg %p147
        $region30: #{tpu_custom_call.1} parent=11 // pred_check_branch
          %223 = sbr.rel (%p221) target = $region32
        $region31: #{tpu_custom_call.1} parent=11 // pred_region
          _
        $region32: #{tpu_custom_call.1} parent=11 // pred_fallthru
          _
        // Predicated region
        $region33: #{tpu_custom_call.1} parent=11 // pred_check
          %p224 = pneg %p168
        $region34: #{tpu_custom_call.1} parent=11 // pred_check_branch
          %226 = sbr.rel (%p224) target = $region36
        $region35: #{tpu_custom_call.1} parent=11 // pred_region
          _
        $region36: #{tpu_custom_call.1} parent=11 // pred_fallthru
          _
      $region12: #{tpu_custom_call.1} parent=5 // pred_fallthru
        _
      %p227 = scmp.lt.s32.totalorder %s16, 2
      // Predicated region
      $region37: #{tpu_custom_call.1} parent=5 // pred_check
        %p228 = pneg %p227
      $region38: #{tpu_custom_call.1} parent=5 // pred_check_branch
        %230 = sbr.rel (%p228) target = $region40
      $region39: #{tpu_custom_call.1} parent=5 // pred_region
        // Predicated region
        $region41: #{tpu_custom_call.1} parent=39 // pred_check
          %p231 = pneg %p36
        $region42: #{tpu_custom_call.1} parent=39 // pred_check_branch
          %233 = sbr.rel (%p231) target = $region44
        $region43: #{tpu_custom_call.1} parent=39 // pred_region
          %s234 = smul.u32 16, %s16
          %p235 = scmp.lt.s32.totalorder %s234, 31
          %s236 = scalar_select %p235, %s234, 31
          %s237 = smul.addr %s236, 8
          %s238 = scalar_lea.vmem %s0, %s237
          %s239 = smul.u32 16, %s16
        $region44: #{tpu_custom_call.1} parent=39 // pred_fallthru
          _
      $region40: #{tpu_custom_call.1} parent=5 // pred_fallthru
        _
      %p240 = scmp.le.s32.totalorder 1, %s16
      %p241 = scmp.lt.s32.totalorder %s16, 3
      %p242 = pnand %p240, %p241
      %p243 = pneg %p242
      // Predicated region
      $region45: #{tpu_custom_call.1} parent=5 // pred_check
        _
      $region46: #{tpu_custom_call.1} parent=5 // pred_check_branch
        %245 = sbr.rel (%p242) target = $region48
      $region47: #{tpu_custom_call.1} parent=5 // pred_region
        %s246 = ssub.s32 %s16, 1
        %s247 = smul.u32 16, %s21
        %p248 = scmp.lt.s32.totalorder %s247, 31
        %s249 = scalar_select %p248, %s247, 31
        %s250 = smul.addr %s249, 8
        %s251 = scalar_lea.vmem %s0, %s250
        %p252 = pneg %p42
        %p253 = pneg %p39
        %p254 = pneg %p63
        %p255 = pneg %p60
        %p256 = pneg %p84
        %p257 = pneg %p81
        %p258 = pneg %p105
        %p259 = pneg %p102
        %p260 = pneg %p126
        %p261 = pneg %p123
        %p262 = pneg %p147
        %p263 = pneg %p144
        %p264 = pneg %p168
        %p265 = pneg %p165
        %p266 = pneg %p194
        %p267 = pneg %p191
        %s268 = sand.u32 %s181, 1
        %s269 = scalar_lea.sflag [#allocation4], %s268
        %s270 = sand.u32 %s181, 1
        %s271 = smul.addr %s270, 32
        %s272 = scalar_lea.vmem [#allocation3], %s271
        %s273 = smul.u32 16, %s21
        %p274 = scmp.lt.s32.totalorder %s273, 31
        %s275 = scalar_select %p274, %s273, 31
        %s276 = smul.addr %s275, 8
        %s277 = scalar_lea.vmem %s0, %s276
        %s278 = smul.u32 16, %s21
        %v279 = vlaneseq
        %v280 = vshrl.u32 %v279, 7
        %v281 = vadd.s32 %v280, 8
        %v282 = vlaneseq
        %v283 = vand.u32 %v282, 127
        %vm284 = vcmp.eq.s32.totalorder %v280, %v283
        %vm285 = vcmp.eq.s32.totalorder %v281, %v283
        %v286 = vsel %vm284, 1, 0
        %v287 = vsel %vm285, 1, 0
        %v288 = vcvt.s32.f32 %v286
        %v289 = vcvt.s32.f32 %v287
        %v290 = vld [vmem:[%s277] sm:$0xff]
        %v291 = vld [vmem:[%s277 + $0x8] sm:$0xff]
        %v292 = vld [vmem:[%s277 + $0x10] sm:$0xff]
        %v293 = vld [vmem:[%s277 + $0x18] sm:$0xff]
        %v294 = vld [vmem:[%s277 + $0x20] sm:$0xff]
        %v295 = vld [vmem:[%s277 + $0x28] sm:$0xff]
        %v296 = vld [vmem:[%s277 + $0x30] sm:$0xff]
        %v297 = vld [vmem:[%s277 + $0x38] sm:$0xff]
        %v298 = vld [vmem:[%s277 + $0x40] sm:$0xff]
        %v299 = vld [vmem:[%s277 + $0x48] sm:$0xff]
        %v300 = vld [vmem:[%s277 + $0x50] sm:$0xff]
        %v301 = vld [vmem:[%s277 + $0x58] sm:$0xff]
        %v302 = vld [vmem:[%s277 + $0x60] sm:$0xff]
        %v303 = vld [vmem:[%s277 + $0x68] sm:$0xff]
        %v304 = vld [vmem:[%s277 + $0x70] sm:$0xff]
        %v305 = vld [vmem:[%s277 + $0x78] sm:$0xff]
        %vm306 = vcmask 130048
        %v308 = vsel %vm306, %v288, 0
        %v311 = vsel %vm306, %v289, 0
        %v314 = vsel %vm306, %v290, 0
        %v317 = vsel %vm306, %v291, 0
        %v320 = vsel %vm306, %v292, 0
        %v323 = vsel %vm306, %v293, 0
        %v326 = vsel %vm306, %v294, 0
        %v329 = vsel %vm306, %v295, 0
        %v332 = vsel %vm306, %v296, 0
        %v335 = vsel %vm306, %v297, 0
        %v338 = vsel %vm306, %v298, 0
        %v341 = vsel %vm306, %v299, 0
        %v344 = vsel %vm306, %v300, 0
        %v347 = vsel %vm306, %v301, 0
        %v350 = vsel %vm306, %v302, 0
        %v353 = vsel %vm306, %v303, 0
        %v356 = vsel %vm306, %v304, 0
        %v359 = vsel %vm306, %v305, 0
        %361 = vmatprep.subr.mxu0 0.0
        %362 = vmatpush1.xpose.msra.mxu0 %v314
        %363 = vmatprep.subr.mxu0 0.0
        %364 = vmatpush1.xpose.msra.mxu0 %v317
        %365 = vmatprep.subr.mxu0 0.0
        %366 = vmatpush1.xpose.msra.mxu0 %v320
        %367 = vmatprep.subr.mxu0 0.0
        %368 = vmatpush1.xpose.msra.mxu0 %v323
        %369 = vmatprep.subr.mxu0 0.0
        %370 = vmatpush1.xpose.msra.mxu0 %v326
        %371 = vmatprep.subr.mxu0 0.0
        %372 = vmatpush1.xpose.msra.mxu0 %v329
        %373 = vmatprep.subr.mxu0 0.0
        %374 = vmatpush1.xpose.msra.mxu0 %v332
        %375 = vmatprep.subr.mxu0 0.0
        %376 = vmatpush1.xpose.msra.mxu0 %v335
        %377 = vmatprep.subr.mxu0 0.0
        %378 = vmatpush1.xpose.msra.mxu0 %v338
        %379 = vmatprep.subr.mxu0 0.0
        %380 = vmatpush1.xpose.msra.mxu0 %v341
        %381 = vmatprep.subr.mxu0 0.0
        %382 = vmatpush1.xpose.msra.mxu0 %v344
        %383 = vmatprep.subr.mxu0 0.0
        %384 = vmatpush1.xpose.msra.mxu0 %v347
        %385 = vmatprep.subr.mxu0 0.0
        %386 = vmatpush1.xpose.msra.mxu0 %v350
        %387 = vmatprep.subr.mxu0 0.0
        %388 = vmatpush1.xpose.msra.mxu0 %v353
        %389 = vmatprep.subr.mxu0 0.0
        %390 = vmatpush1.xpose.msra.mxu0 %v356
        %391 = vmatprep.subr.mxu0 0.0
        %392 = vmatpush1.xpose.msra.mxu0 %v359
        %393 = vmatprep.subr.mxu0 0.0
        %394 = vmatpush1.xpose.msra.mxu0 0.0
        %395 = vmatprep.subr.mxu0 0.0
        %396 = vmatpush1.xpose.msra.mxu0 0.0
        %397 = vmatprep.subr.mxu0 0.0
        %398 = vmatpush1.xpose.msra.mxu0 0.0
        %399 = vmatprep.subr.mxu0 0.0
        %400 = vmatpush1.xpose.msra.mxu0 0.0
        %401 = vmatprep.subr.mxu0 0.0
        %402 = vmatpush1.xpose.msra.mxu0 0.0
        %403 = vmatprep.subr.mxu0 0.0
        %404 = vmatpush1.xpose.msra.mxu0 0.0
        %405 = vmatprep.subr.mxu0 0.0
        %406 = vmatpush1.xpose.msra.mxu0 0.0
        %407 = vmatprep.subr.mxu0 0.0
        %408 = vmatpush1.xpose.msra.mxu0 0.0
        %409 = vmatprep.subr.mxu0 0.0
        %410 = vmatpush1.xpose.msra.mxu0 0.0
        %411 = vmatprep.subr.mxu0 0.0
        %412 = vmatpush1.xpose.msra.mxu0 0.0
        %413 = vmatprep.subr.mxu0 0.0
        %414 = vmatpush1.xpose.msra.mxu0 0.0
        %415 = vmatprep.subr.mxu0 0.0
        %416 = vmatpush1.xpose.msra.mxu0 0.0
        %417 = vmatprep.subr.mxu0 0.0
        %418 = vmatpush1.xpose.msra.mxu0 0.0
        %419 = vmatprep.subr.mxu0 0.0
        %420 = vmatpush1.xpose.msra.mxu0 0.0
        %421 = vmatprep.subr.mxu0 0.0
        %422 = vmatpush1.xpose.msra.mxu0 0.0
        %423 = vmatprep.subr.mxu0 0.0
        %424 = vmatpush1.xpose.msra.mxu0 0.0
        %425 = vmatprep.mubr.f32.mxu0 0.0
        %426 = vmatmul.mubr.f32.gmra.mrb[0].mxu0 %v308
        %v427 = vpop.f32.mrb[0].mxu0
        %v428 = vadd.f32 0.0, %v427
        %v429 = vpop.f32.mrb[0].mxu0
        %430 = vmatprep.mubr.f32.mxu0 0.0
        %431 = vmatmul.mubr.f32.gmra.mrb[0].mxu0 %v311
        %v432 = vpop.f32.mrb[0].mxu0
        %v433 = vadd.f32 0.0, %v432
        %v434 = vpop.f32.mrb[0].mxu0
        %435 = vdwg.mxu0
        %v436 = vld [vmem:[%s1] sm:$0xff]
        %v437 = vld [vmem:[%s2] sm:$0xff]
        %439 = vset.pattern.permute.xlu0 0
        %440 = vperm.xlu0 %439, %v436
        %v441 = vpop.permute.xlu0 %440
        %v443 = vlaneseq
        %v444 = vshrl.u32 %v443, 7
        %v445 = vsub.s32 0, %v444
        %v446 = vrot.slane %v428, %v445
        %v447 = vmul.f32 %v441, %v446
        %449 = vset.pattern.permute.xlu0 0
        %450 = vperm.xlu0 %449, %v437
        %v451 = vpop.permute.xlu0 %450
        %v453 = vadd.f32 %v447, %v451
        %454 = vset.pattern.permute.xlu0 1
        %455 = vperm.xlu0 %454, %v436
        %v456 = vpop.permute.xlu0 %455
        %v458 = vlaneseq
        %v459 = vshrl.u32 %v458, 7
        %v460 = vsub.s32 1, %v459
        %v461 = vrot.slane %v428, %v460
        %v462 = vmul.f32 %v456, %v461
        %463 = vset.pattern.permute.xlu0 1
        %464 = vperm.xlu0 %463, %v437
        %v465 = vpop.permute.xlu0 %464
        %v467 = vadd.f32 %v462, %v465
        %v468 = vmul.f32 %v453, %v467
        %469 = vset.pattern.permute.xlu0 2
        %470 = vperm.xlu0 %469, %v436
        %v471 = vpop.permute.xlu0 %470
        %v473 = vlaneseq
        %v474 = vshrl.u32 %v473, 7
        %v475 = vsub.s32 2, %v474
        %v476 = vrot.slane %v428, %v475
        %v477 = vmul.f32 %v471, %v476
        %478 = vset.pattern.permute.xlu0 2
        %479 = vperm.xlu0 %478, %v437
        %v480 = vpop.permute.xlu0 %479
        %v482 = vadd.f32 %v477, %v480
        %v483 = vmul.f32 %v468, %v482
        %484 = vset.pattern.permute.xlu0 3
        %485 = vperm.xlu0 %484, %v436
        %v486 = vpop.permute.xlu0 %485
        %v488 = vlaneseq
        %v489 = vshrl.u32 %v488, 7
        %v490 = vsub.s32 3, %v489
        %v491 = vrot.slane %v428, %v490
        %v492 = vmul.f32 %v486, %v491
        %493 = vset.pattern.permute.xlu0 3
        %494 = vperm.xlu0 %493, %v437
        %v495 = vpop.permute.xlu0 %494
        %v497 = vadd.f32 %v492, %v495
        %v498 = vmul.f32 %v483, %v497
        %499 = vset.pattern.permute.xlu0 4
        %500 = vperm.xlu0 %499, %v436
        %v501 = vpop.permute.xlu0 %500
        %v503 = vlaneseq
        %v504 = vshrl.u32 %v503, 7
        %v505 = vsub.s32 4, %v504
        %v506 = vrot.slane %v428, %v505
        %v507 = vmul.f32 %v501, %v506
        %508 = vset.pattern.permute.xlu0 4
        %509 = vperm.xlu0 %508, %v437
        %v510 = vpop.permute.xlu0 %509
        %v512 = vadd.f32 %v507, %v510
        %v513 = vmul.f32 %v498, %v512
        %514 = vset.pattern.permute.xlu0 5
        %515 = vperm.xlu0 %514, %v436
        %v516 = vpop.permute.xlu0 %515
        %v518 = vlaneseq
        %v519 = vshrl.u32 %v518, 7
        %v520 = vsub.s32 5, %v519
        %v521 = vrot.slane %v428, %v520
        %v522 = vmul.f32 %v516, %v521
        %523 = vset.pattern.permute.xlu0 5
        %524 = vperm.xlu0 %523, %v437
        %v525 = vpop.permute.xlu0 %524
        %v527 = vadd.f32 %v522, %v525
        %v528 = vmul.f32 %v513, %v527
        %529 = vset.pattern.permute.xlu0 6
        %530 = vperm.xlu0 %529, %v436
        %v531 = vpop.permute.xlu0 %530
        %v533 = vlaneseq
        %v534 = vshrl.u32 %v533, 7
        %v535 = vsub.s32 6, %v534
        %v536 = vrot.slane %v428, %v535
        %v537 = vmul.f32 %v531, %v536
        %538 = vset.pattern.permute.xlu0 6
        %539 = vperm.xlu0 %538, %v437
        %v540 = vpop.permute.xlu0 %539
        %v542 = vadd.f32 %v537, %v540
        %v543 = vmul.f32 %v528, %v542
        %544 = vset.pattern.permute.xlu0 7
        %545 = vperm.xlu0 %544, %v436
        %v546 = vpop.permute.xlu0 %545
        %v548 = vlaneseq
        %v549 = vshrl.u32 %v548, 7
        %v550 = vsub.s32 7, %v549
        %v551 = vrot.slane %v428, %v550
        %v552 = vmul.f32 %v546, %v551
        %553 = vset.pattern.permute.xlu0 7
        %554 = vperm.xlu0 %553, %v437
        %v555 = vpop.permute.xlu0 %554
        %v557 = vadd.f32 %v552, %v555
        %v558 = vmul.f32 %v543, %v557
        %559 = vset.pattern.permute.xlu0 8
        %560 = vperm.xlu0 %559, %v436
        %v561 = vpop.permute.xlu0 %560
        %v563 = vlaneseq
        %v564 = vshrl.u32 %v563, 7
        %v565 = vsub.s32 0, %v564
        %v566 = vrot.slane %v433, %v565
        %v567 = vmul.f32 %v561, %v566
        %568 = vset.pattern.permute.xlu0 8
        %569 = vperm.xlu0 %568, %v437
        %v570 = vpop.permute.xlu0 %569
        %v572 = vadd.f32 %v567, %v570
        %v573 = vmul.f32 %v558, %v572
        %574 = vset.pattern.permute.xlu0 9
        %575 = vperm.xlu0 %574, %v436
        %v576 = vpop.permute.xlu0 %575
        %v578 = vlaneseq
        %v579 = vshrl.u32 %v578, 7
        %v580 = vsub.s32 1, %v579
        %v581 = vrot.slane %v433, %v580
        %v582 = vmul.f32 %v576, %v581
        %583 = vset.pattern.permute.xlu0 9
        %584 = vperm.xlu0 %583, %v437
        %v585 = vpop.permute.xlu0 %584
        %v587 = vadd.f32 %v582, %v585
        %v588 = vmul.f32 %v573, %v587
        %589 = vset.pattern.permute.xlu0 10
        %590 = vperm.xlu0 %589, %v436
        %v591 = vpop.permute.xlu0 %590
        %v593 = vlaneseq
        %v594 = vshrl.u32 %v593, 7
        %v595 = vsub.s32 2, %v594
        %v596 = vrot.slane %v433, %v595
        %v597 = vmul.f32 %v591, %v596
        %598 = vset.pattern.permute.xlu0 10
        %599 = vperm.xlu0 %598, %v437
        %v600 = vpop.permute.xlu0 %599
        %v602 = vadd.f32 %v597, %v600
        %v603 = vmul.f32 %v588, %v602
        %604 = vset.pattern.permute.xlu0 11
        %605 = vperm.xlu0 %604, %v436
        %v606 = vpop.permute.xlu0 %605
        %v608 = vlaneseq
        %v609 = vshrl.u32 %v608, 7
        %v610 = vsub.s32 3, %v609
        %v611 = vrot.slane %v433, %v610
        %v612 = vmul.f32 %v606, %v611
        %613 = vset.pattern.permute.xlu0 11
        %614 = vperm.xlu0 %613, %v437
        %v615 = vpop.permute.xlu0 %614
        %v617 = vadd.f32 %v612, %v615
        %v618 = vmul.f32 %v603, %v617
        %619 = vset.pattern.permute.xlu0 12
        %620 = vperm.xlu0 %619, %v436
        %v621 = vpop.permute.xlu0 %620
        %v623 = vlaneseq
        %v624 = vshrl.u32 %v623, 7
        %v625 = vsub.s32 4, %v624
        %v626 = vrot.slane %v433, %v625
        %v627 = vmul.f32 %v621, %v626
        %628 = vset.pattern.permute.xlu0 12
        %629 = vperm.xlu0 %628, %v437
        %v630 = vpop.permute.xlu0 %629
        %v632 = vadd.f32 %v627, %v630
        %v633 = vmul.f32 %v618, %v632
        %634 = vset.pattern.permute.xlu0 13
        %635 = vperm.xlu0 %634, %v436
        %v636 = vpop.permute.xlu0 %635
        %v638 = vlaneseq
        %v639 = vshrl.u32 %v638, 7
        %v640 = vsub.s32 5, %v639
        %v641 = vrot.slane %v433, %v640
        %v642 = vmul.f32 %v636, %v641
        %643 = vset.pattern.permute.xlu0 13
        %644 = vperm.xlu0 %643, %v437
        %v645 = vpop.permute.xlu0 %644
        %v647 = vadd.f32 %v642, %v645
        %v648 = vmul.f32 %v633, %v647
        %649 = vset.pattern.permute.xlu0 14
        %650 = vperm.xlu0 %649, %v436
        %v651 = vpop.permute.xlu0 %650
        %v653 = vlaneseq
        %v654 = vshrl.u32 %v653, 7
        %v655 = vsub.s32 6, %v654
        %v656 = vrot.slane %v433, %v655
        %v657 = vmul.f32 %v651, %v656
        %658 = vset.pattern.permute.xlu0 14
        %659 = vperm.xlu0 %658, %v437
        %v660 = vpop.permute.xlu0 %659
        %v662 = vadd.f32 %v657, %v660
        %v663 = vmul.f32 %v648, %v662
        %664 = vset.pattern.permute.xlu0 15
        %665 = vperm.xlu0 %664, %v436
        %v666 = vpop.permute.xlu0 %665
        %v668 = vlaneseq
        %v669 = vshrl.u32 %v668, 7
        %v670 = vsub.s32 7, %v669
        %v671 = vrot.slane %v433, %v670
        %v672 = vmul.f32 %v666, %v671
        %673 = vset.pattern.permute.xlu0 15
        %674 = vperm.xlu0 %673, %v437
        %v675 = vpop.permute.xlu0 %674
        %v677 = vadd.f32 %v672, %v675
        %v678 = vmul.f32 %v663, %v677
        %679 = vst [vmem:[#allocation2 + $0xc0] sm:$0xff] %v428
        %680 = vst [vmem:[#allocation2 + $0xc8] sm:$0xff] %v433
        %681 = vst [vmem:[#allocation2 + $0xd0] sm:$0xff] %v678
        %v682 = vld [vmem:[#allocation2 + $0xc0] sm:$0xff]
        %v683 = vld [vmem:[#allocation2 + $0xc8] sm:$0xff]
        %v684 = vld [vmem:[#allocation2 + $0xd0] sm:$0xff]
        %v685 = vld [vmem:[%s3] sm:$0xff]
        %v686 = vld [vmem:[%s3 + $0x8] sm:$0xff]
        %v687 = vld [vmem:[%s3 + $0x10] sm:$0xff]
        %689 = vset.pattern.permute.xlu0 0
        %690 = vperm.xlu0 %689, %v685
        %v691 = vpop.permute.xlu0 %690
        %694 = vset.pattern.permute.xlu0 0
        %695 = vperm.xlu0 %694, %v686
        %v696 = vpop.permute.xlu0 %695
        %699 = vset.pattern.permute.xlu0 0
        %700 = vperm.xlu0 %699, %v687
        %v701 = vpop.permute.xlu0 %700
        %v703 = vmul.f32 %v682, %v691
        %v704 = vmul.f32 %v683, %v696
        %v705 = vmul.f32 %v684, %v701
        %v706 = vld [vmem:[%s4] sm:$0xff]
        %v707 = vld [vmem:[%s4 + $0x8] sm:$0xff]
        %v708 = vld [vmem:[%s4 + $0x10] sm:$0xff]
        %710 = vset.pattern.permute.xlu0 0
        %711 = vperm.xlu0 %710, %v706
        %v712 = vpop.permute.xlu0 %711
        %715 = vset.pattern.permute.xlu0 0
        %716 = vperm.xlu0 %715, %v707
        %v717 = vpop.permute.xlu0 %716
        %720 = vset.pattern.permute.xlu0 0
        %721 = vperm.xlu0 %720, %v708
        %v722 = vpop.permute.xlu0 %721
        %v724 = vadd.f32 %v703, %v712
        %v725 = vadd.f32 %v704, %v717
        %v726 = vadd.f32 %v705, %v722
        %v727 = vmul.f32 %v724, %v724
        %v728 = vmul.f32 %v725, %v725
        %v729 = vmul.f32 %v726, %v726
        %v730 = vsub.f32 0.0, %v727
        %v731 = vsub.f32 0.0, %v728
        %v732 = vsub.f32 0.0, %v729
        %v733 = vmul.f32 %v730, 1.442695
        %v734 = vpow.pop %v733
        %v735 = vmul.f32 %v731, 1.442695
        %v736 = vpow.pop %v735
        %v737 = vmul.f32 %v732, 1.442695
        %v738 = vpow.pop %v737
        %739 = vst [vmem:[#allocation2] sm:$0xff] %v734
        %740 = vst [vmem:[#allocation2 + $0x8] sm:$0xff] %v736
        %741 = vst [vmem:[#allocation2 + $0x10] sm:$0xff] %v738
        %v742 = vld [vmem:[#allocation2 + $0xc0] sm:$0xff]
        %v743 = vld [vmem:[#allocation2 + $0xc8] sm:$0xff]
        %v744 = vld [vmem:[#allocation2 + $0xd0] sm:$0xff]
        %v745 = vld [vmem:[%s3 + $0x18] sm:$0xff]
        %v746 = vld [vmem:[%s3 + $0x20] sm:$0xff]
        %v747 = vld [vmem:[%s3 + $0x28] sm:$0xff]
        %749 = vset.pattern.permute.xlu0 0
        %750 = vperm.xlu0 %749, %v745
        %v751 = vpop.permute.xlu0 %750
        %754 = vset.pattern.permute.xlu0 0
        %755 = vperm.xlu0 %754, %v746
        %v756 = vpop.permute.xlu0 %755
        %759 = vset.pattern.permute.xlu0 0
        %760 = vperm.xlu0 %759, %v747
        %v761 = vpop.permute.xlu0 %760
        %v763 = vmul.f32 %v742, %v751
        %v764 = vmul.f32 %v743, %v756
        %v765 = vmul.f32 %v744, %v761
        %v766 = vld [vmem:[%s4 + $0x18] sm:$0xff]
        %v767 = vld [vmem:[%s4 + $0x20] sm:$0xff]
        %v768 = vld [vmem:[%s4 + $0x28] sm:$0xff]
        %770 = vset.pattern.permute.xlu0 0
        %771 = vperm.xlu0 %770, %v766
        %v772 = vpop.permute.xlu0 %771
        %775 = vset.pattern.permute.xlu0 0
        %776 = vperm.xlu0 %775, %v767
        %v777 = vpop.permute.xlu0 %776
        %780 = vset.pattern.permute.xlu0 0
        %781 = vperm.xlu0 %780, %v768
        %v782 = vpop.permute.xlu0 %781
        %v784 = vadd.f32 %v763, %v772
        %v785 = vadd.f32 %v764, %v777
        %v786 = vadd.f32 %v765, %v782
        %v787 = vmul.f32 %v784, %v784
        %v788 = vmul.f32 %v785, %v785
        %v789 = vmul.f32 %v786, %v786
        %v790 = vsub.f32 0.0, %v787
        %v791 = vsub.f32 0.0, %v788
        %v792 = vsub.f32 0.0, %v789
        %v793 = vmul.f32 %v790, 1.442695
        %v794 = vpow.pop %v793
        %v795 = vmul.f32 %v791, 1.442695
        %v796 = vpow.pop %v795
        %v797 = vmul.f32 %v792, 1.442695
        %v798 = vpow.pop %v797
        %799 = vst [vmem:[#allocation2 + $0x18] sm:$0xff] %v794
        %800 = vst [vmem:[#allocation2 + $0x20] sm:$0xff] %v796
        %801 = vst [vmem:[#allocation2 + $0x28] sm:$0xff] %v798
        %v802 = vld [vmem:[#allocation2 + $0xc0] sm:$0xff]
        %v803 = vld [vmem:[#allocation2 + $0xc8] sm:$0xff]
        %v804 = vld [vmem:[#allocation2 + $0xd0] sm:$0xff]
        %v805 = vld [vmem:[%s3 + $0x30] sm:$0xff]
        %v806 = vld [vmem:[%s3 + $0x38] sm:$0xff]
        %v807 = vld [vmem:[%s3 + $0x40] sm:$0xff]
        %809 = vset.pattern.permute.xlu0 0
        %810 = vperm.xlu0 %809, %v805
        %v811 = vpop.permute.xlu0 %810
        %814 = vset.pattern.permute.xlu0 0
        %815 = vperm.xlu0 %814, %v806
        %v816 = vpop.permute.xlu0 %815
        %819 = vset.pattern.permute.xlu0 0
        %820 = vperm.xlu0 %819, %v807
        %v821 = vpop.permute.xlu0 %820
        %v823 = vmul.f32 %v802, %v811
        %v824 = vmul.f32 %v803, %v816
        %v825 = vmul.f32 %v804, %v821
        %v826 = vld [vmem:[%s4 + $0x30] sm:$0xff]
        %v827 = vld [vmem:[%s4 + $0x38] sm:$0xff]
        %v828 = vld [vmem:[%s4 + $0x40] sm:$0xff]
        %830 = vset.pattern.permute.xlu0 0
        %831 = vperm.xlu0 %830, %v826
        %v832 = vpop.permute.xlu0 %831
        %835 = vset.pattern.permute.xlu0 0
        %836 = vperm.xlu0 %835, %v827
        %v837 = vpop.permute.xlu0 %836
        %840 = vset.pattern.permute.xlu0 0
        %841 = vperm.xlu0 %840, %v828
        %v842 = vpop.permute.xlu0 %841
        %v844 = vadd.f32 %v823, %v832
        %v845 = vadd.f32 %v824, %v837
        %v846 = vadd.f32 %v825, %v842
        %v847 = vmul.f32 %v844, %v844
        %v848 = vmul.f32 %v845, %v845
        %v849 = vmul.f32 %v846, %v846
        %v850 = vsub.f32 0.0, %v847
        %v851 = vsub.f32 0.0, %v848
        %v852 = vsub.f32 0.0, %v849
        %v853 = vmul.f32 %v850, 1.442695
        %v854 = vpow.pop %v853
        %v855 = vmul.f32 %v851, 1.442695
        %v856 = vpow.pop %v855
        %v857 = vmul.f32 %v852, 1.442695
        %v858 = vpow.pop %v857
        %859 = vst [vmem:[#allocation2 + $0x30] sm:$0xff] %v854
        %860 = vst [vmem:[#allocation2 + $0x38] sm:$0xff] %v856
        %861 = vst [vmem:[#allocation2 + $0x40] sm:$0xff] %v858
        %v862 = vld [vmem:[#allocation2 + $0xc0] sm:$0xff]
        %v863 = vld [vmem:[#allocation2 + $0xc8] sm:$0xff]
        %v864 = vld [vmem:[#allocation2 + $0xd0] sm:$0xff]
        %v865 = vld [vmem:[%s3 + $0x48] sm:$0xff]
        %v866 = vld [vmem:[%s3 + $0x50] sm:$0xff]
        %v867 = vld [vmem:[%s3 + $0x58] sm:$0xff]
        %869 = vset.pattern.permute.xlu0 0
        %870 = vperm.xlu0 %869, %v865
        %v871 = vpop.permute.xlu0 %870
        %874 = vset.pattern.permute.xlu0 0
        %875 = vperm.xlu0 %874, %v866
        %v876 = vpop.permute.xlu0 %875
        %879 = vset.pattern.permute.xlu0 0
        %880 = vperm.xlu0 %879, %v867
        %v881 = vpop.permute.xlu0 %880
        %v883 = vmul.f32 %v862, %v871
        %v884 = vmul.f32 %v863, %v876
        %v885 = vmul.f32 %v864, %v881
        %v886 = vld [vmem:[%s4 + $0x48] sm:$0xff]
        %v887 = vld [vmem:[%s4 + $0x50] sm:$0xff]
        %v888 = vld [vmem:[%s4 + $0x58] sm:$0xff]
        %890 = vset.pattern.permute.xlu0 0
        %891 = vperm.xlu0 %890, %v886
        %v892 = vpop.permute.xlu0 %891
        %895 = vset.pattern.permute.xlu0 0
        %896 = vperm.xlu0 %895, %v887
        %v897 = vpop.permute.xlu0 %896
        %900 = vset.pattern.permute.xlu0 0
        %901 = vperm.xlu0 %900, %v888
        %v902 = vpop.permute.xlu0 %901
        %v904 = vadd.f32 %v883, %v892
        %v905 = vadd.f32 %v884, %v897
        %v906 = vadd.f32 %v885, %v902
        %v907 = vmul.f32 %v904, %v904
        %v908 = vmul.f32 %v905, %v905
        %v909 = vmul.f32 %v906, %v906
        %v910 = vsub.f32 0.0, %v907
        %v911 = vsub.f32 0.0, %v908
        %v912 = vsub.f32 0.0, %v909
        %v913 = vmul.f32 %v910, 1.442695
        %v914 = vpow.pop %v913
        %v915 = vmul.f32 %v911, 1.442695
        %v916 = vpow.pop %v915
        %v917 = vmul.f32 %v912, 1.442695
        %v918 = vpow.pop %v917
        %919 = vst [vmem:[#allocation2 + $0x48] sm:$0xff] %v914
        %920 = vst [vmem:[#allocation2 + $0x50] sm:$0xff] %v916
        %921 = vst [vmem:[#allocation2 + $0x58] sm:$0xff] %v918
        %v922 = vld [vmem:[#allocation2 + $0xc0] sm:$0xff]
        %v923 = vld [vmem:[#allocation2 + $0xc8] sm:$0xff]
        %v924 = vld [vmem:[#allocation2 + $0xd0] sm:$0xff]
        %v925 = vld [vmem:[%s3 + $0x60] sm:$0xff]
        %v926 = vld [vmem:[%s3 + $0x68] sm:$0xff]
        %v927 = vld [vmem:[%s3 + $0x70] sm:$0xff]
        %929 = vset.pattern.permute.xlu0 0
        %930 = vperm.xlu0 %929, %v925
        %v931 = vpop.permute.xlu0 %930
        %934 = vset.pattern.permute.xlu0 0
        %935 = vperm.xlu0 %934, %v926
        %v936 = vpop.permute.xlu0 %935
        %939 = vset.pattern.permute.xlu0 0
        %940 = vperm.xlu0 %939, %v927
        %v941 = vpop.permute.xlu0 %940
        %v943 = vmul.f32 %v922, %v931
        %v944 = vmul.f32 %v923, %v936
        %v945 = vmul.f32 %v924, %v941
        %v946 = vld [vmem:[%s4 + $0x60] sm:$0xff]
        %v947 = vld [vmem:[%s4 + $0x68] sm:$0xff]
        %v948 = vld [vmem:[%s4 + $0x70] sm:$0xff]
        %950 = vset.pattern.permute.xlu0 0
        %951 = vperm.xlu0 %950, %v946
        %v952 = vpop.permute.xlu0 %951
        %955 = vset.pattern.permute.xlu0 0
        %956 = vperm.xlu0 %955, %v947
        %v957 = vpop.permute.xlu0 %956
        %960 = vset.pattern.permute.xlu0 0
        %961 = vperm.xlu0 %960, %v948
        %v962 = vpop.permute.xlu0 %961
        %v964 = vadd.f32 %v943, %v952
        %v965 = vadd.f32 %v944, %v957
        %v966 = vadd.f32 %v945, %v962
        %v967 = vmul.f32 %v964, %v964
        %v968 = vmul.f32 %v965, %v965
        %v969 = vmul.f32 %v966, %v966
        %v970 = vsub.f32 0.0, %v967
        %v971 = vsub.f32 0.0, %v968
        %v972 = vsub.f32 0.0, %v969
        %v973 = vmul.f32 %v970, 1.442695
        %v974 = vpow.pop %v973
        %v975 = vmul.f32 %v971, 1.442695
        %v976 = vpow.pop %v975
        %v977 = vmul.f32 %v972, 1.442695
        %v978 = vpow.pop %v977
        %979 = vst [vmem:[#allocation2 + $0x60] sm:$0xff] %v974
        %980 = vst [vmem:[#allocation2 + $0x68] sm:$0xff] %v976
        %981 = vst [vmem:[#allocation2 + $0x70] sm:$0xff] %v978
        %v982 = vld [vmem:[#allocation2 + $0xc0] sm:$0xff]
        %v983 = vld [vmem:[#allocation2 + $0xc8] sm:$0xff]
        %v984 = vld [vmem:[#allocation2 + $0xd0] sm:$0xff]
        %v985 = vld [vmem:[%s3 + $0x78] sm:$0xff]
        %v986 = vld [vmem:[%s3 + $0x80] sm:$0xff]
        %v987 = vld [vmem:[%s3 + $0x88] sm:$0xff]
        %989 = vset.pattern.permute.xlu0 0
        %990 = vperm.xlu0 %989, %v985
        %v991 = vpop.permute.xlu0 %990
        %994 = vset.pattern.permute.xlu0 0
        %995 = vperm.xlu0 %994, %v986
        %v996 = vpop.permute.xlu0 %995
        %999 = vset.pattern.permute.xlu0 0
        %1000 = vperm.xlu0 %999, %v987
        %v1001 = vpop.permute.xlu0 %1000
        %v1003 = vmul.f32 %v982, %v991
        %v1004 = vmul.f32 %v983, %v996
        %v1005 = vmul.f32 %v984, %v1001
        %v1006 = vld [vmem:[%s4 + $0x78] sm:$0xff]
        %v1007 = vld [vmem:[%s4 + $0x80] sm:$0xff]
        %v1008 = vld [vmem:[%s4 + $0x88] sm:$0xff]
        %1010 = vset.pattern.permute.xlu0 0
        %1011 = vperm.xlu0 %1010, %v1006
        %v1012 = vpop.permute.xlu0 %1011
        %1015 = vset.pattern.permute.xlu0 0
        %1016 = vperm.xlu0 %1015, %v1007
        %v1017 = vpop.permute.xlu0 %1016
        %1020 = vset.pattern.permute.xlu0 0
        %1021 = vperm.xlu0 %1020, %v1008
        %v1022 = vpop.permute.xlu0 %1021
        %v1024 = vadd.f32 %v1003, %v1012
        %v1025 = vadd.f32 %v1004, %v1017
        %v1026 = vadd.f32 %v1005, %v1022
        %v1027 = vmul.f32 %v1024, %v1024
        %v1028 = vmul.f32 %v1025, %v1025
        %v1029 = vmul.f32 %v1026, %v1026
        %v1030 = vsub.f32 0.0, %v1027
        %v1031 = vsub.f32 0.0, %v1028
        %v1032 = vsub.f32 0.0, %v1029
        %v1033 = vmul.f32 %v1030, 1.442695
        %v1034 = vpow.pop %v1033
        %v1035 = vmul.f32 %v1031, 1.442695
        %v1036 = vpow.pop %v1035
        %v1037 = vmul.f32 %v1032, 1.442695
        %v1038 = vpow.pop %v1037
        %1039 = vst [vmem:[#allocation2 + $0x78] sm:$0xff] %v1034
        %1040 = vst [vmem:[#allocation2 + $0x80] sm:$0xff] %v1036
        %1041 = vst [vmem:[#allocation2 + $0x88] sm:$0xff] %v1038
        %v1042 = vld [vmem:[#allocation2 + $0xc0] sm:$0xff]
        %v1043 = vld [vmem:[#allocation2 + $0xc8] sm:$0xff]
        %v1044 = vld [vmem:[#allocation2 + $0xd0] sm:$0xff]
        %v1045 = vld [vmem:[%s3 + $0x90] sm:$0xff]
        %v1046 = vld [vmem:[%s3 + $0x98] sm:$0xff]
        %v1047 = vld [vmem:[%s3 + $0xa0] sm:$0xff]
        %1049 = vset.pattern.permute.xlu0 0
        %1050 = vperm.xlu0 %1049, %v1045
        %v1051 = vpop.permute.xlu0 %1050
        %1054 = vset.pattern.permute.xlu0 0
        %1055 = vperm.xlu0 %1054, %v1046
        %v1056 = vpop.permute.xlu0 %1055
        %1059 = vset.pattern.permute.xlu0 0
        %1060 = vperm.xlu0 %1059, %v1047
        %v1061 = vpop.permute.xlu0 %1060
        %v1063 = vmul.f32 %v1042, %v1051
        %v1064 = vmul.f32 %v1043, %v1056
        %v1065 = vmul.f32 %v1044, %v1061
        %v1066 = vld [vmem:[%s4 + $0x90] sm:$0xff]
        %v1067 = vld [vmem:[%s4 + $0x98] sm:$0xff]
        %v1068 = vld [vmem:[%s4 + $0xa0] sm:$0xff]
        %1070 = vset.pattern.permute.xlu0 0
        %1071 = vperm.xlu0 %1070, %v1066
        %v1072 = vpop.permute.xlu0 %1071
        %1075 = vset.pattern.permute.xlu0 0
        %1076 = vperm.xlu0 %1075, %v1067
        %v1077 = vpop.permute.xlu0 %1076
        %1080 = vset.pattern.permute.xlu0 0
        %1081 = vperm.xlu0 %1080, %v1068
        %v1082 = vpop.permute.xlu0 %1081
        %v1084 = vadd.f32 %v1063, %v1072
        %v1085 = vadd.f32 %v1064, %v1077
        %v1086 = vadd.f32 %v1065, %v1082
        %v1087 = vmul.f32 %v1084, %v1084
        %v1088 = vmul.f32 %v1085, %v1085
        %v1089 = vmul.f32 %v1086, %v1086
        %v1090 = vsub.f32 0.0, %v1087
        %v1091 = vsub.f32 0.0, %v1088
        %v1092 = vsub.f32 0.0, %v1089
        %v1093 = vmul.f32 %v1090, 1.442695
        %v1094 = vpow.pop %v1093
        %v1095 = vmul.f32 %v1091, 1.442695
        %v1096 = vpow.pop %v1095
        %v1097 = vmul.f32 %v1092, 1.442695
        %v1098 = vpow.pop %v1097
        %1099 = vst [vmem:[#allocation2 + $0x90] sm:$0xff] %v1094
        %1100 = vst [vmem:[#allocation2 + $0x98] sm:$0xff] %v1096
        %1101 = vst [vmem:[#allocation2 + $0xa0] sm:$0xff] %v1098
        %v1102 = vld [vmem:[#allocation2 + $0xc0] sm:$0xff]
        %v1103 = vld [vmem:[#allocation2 + $0xc8] sm:$0xff]
        %v1104 = vld [vmem:[#allocation2 + $0xd0] sm:$0xff]
        %v1105 = vld [vmem:[%s3 + $0xa8] sm:$0xff]
        %v1106 = vld [vmem:[%s3 + $0xb0] sm:$0xff]
        %v1107 = vld [vmem:[%s3 + $0xb8] sm:$0xff]
        %1109 = vset.pattern.permute.xlu0 0
        %1110 = vperm.xlu0 %1109, %v1105
        %v1111 = vpop.permute.xlu0 %1110
        %1114 = vset.pattern.permute.xlu0 0
        %1115 = vperm.xlu0 %1114, %v1106
        %v1116 = vpop.permute.xlu0 %1115
        %1119 = vset.pattern.permute.xlu0 0
        %1120 = vperm.xlu0 %1119, %v1107
        %v1121 = vpop.permute.xlu0 %1120
        %v1123 = vmul.f32 %v1102, %v1111
        %v1124 = vmul.f32 %v1103, %v1116
        %v1125 = vmul.f32 %v1104, %v1121
        %v1126 = vld [vmem:[%s4 + $0xa8] sm:$0xff]
        %v1127 = vld [vmem:[%s4 + $0xb0] sm:$0xff]
        %v1128 = vld [vmem:[%s4 + $0xb8] sm:$0xff]
        %1130 = vset.pattern.permute.xlu0 0
        %1131 = vperm.xlu0 %1130, %v1126
        %v1132 = vpop.permute.xlu0 %1131
        %1135 = vset.pattern.permute.xlu0 0
        %1136 = vperm.xlu0 %1135, %v1127
        %v1137 = vpop.permute.xlu0 %1136
        %1140 = vset.pattern.permute.xlu0 0
        %1141 = vperm.xlu0 %1140, %v1128
        %v1142 = vpop.permute.xlu0 %1141
        %v1144 = vadd.f32 %v1123, %v1132
        %v1145 = vadd.f32 %v1124, %v1137
        %v1146 = vadd.f32 %v1125, %v1142
        %v1147 = vmul.f32 %v1144, %v1144
        %v1148 = vmul.f32 %v1145, %v1145
        %v1149 = vmul.f32 %v1146, %v1146
        %v1150 = vsub.f32 0.0, %v1147
        %v1151 = vsub.f32 0.0, %v1148
        %v1152 = vsub.f32 0.0, %v1149
        %v1153 = vmul.f32 %v1150, 1.442695
        %v1154 = vpow.pop %v1153
        %v1155 = vmul.f32 %v1151, 1.442695
        %v1156 = vpow.pop %v1155
        %v1157 = vmul.f32 %v1152, 1.442695
        %v1158 = vpow.pop %v1157
        %1159 = vst [vmem:[#allocation2 + $0xa8] sm:$0xff] %v1154
        %1160 = vst [vmem:[#allocation2 + $0xb0] sm:$0xff] %v1156
        %1161 = vst [vmem:[#allocation2 + $0xb8] sm:$0xff] %v1158
        %v1162 = vld [vmem:[#allocation2 + $0xc0] sm:$0xff]
        %v1163 = vld [vmem:[#allocation2 + $0xc8] sm:$0xff]
        %v1164 = vld [vmem:[#allocation2 + $0xd0] sm:$0xff]
        %v1165 = vand.u32 2147483647, %v1162
        %vm1166 = vcmp.le.f32.partialorder %v1165, 0.7853982
        %vm1167 = vcmp.lt.s32.totalorder %v1162, 0
        %v1168 = vand.u32 %v1162, 2139095040
        %v1169 = vshrl.u32 %v1168, 23
        %v1170 = vsub.s32 %v1169, 127
        %v1171 = vand.u32 2147483647, %v1162
        %v1172 = vand.u32 %v1171, 8388607
        %v1173 = vor.u32 %v1172, 8388608
        %v1174 = vsub.s32 0, %v1173
        %v1175 = vadd.s32 %v1170, 1
        %vm1176 = vcmp.gt.s32.totalorder %v1175, 0
        %v1177 = vsel %vm1176, %v1175, 0
        %v1178 = vshrl.u32 %v1177, 5
        %v1179 = vand.u32 %v1177, 31
        %v1180 = vsub.s32 32, %v1179
        %v1181 = vshrl.u32 683565275, %v1180
        %v1182 = vshll.u32 683565275, %v1179
        %v1183 = vshrl.u32 2475754826, %v1180
        %v1184 = vor.u32 %v1182, %v1183
        %v1185 = vshll.u32 2475754826, %v1179
        %v1186 = vshrl.u32 2131351028, %v1180
        %v1187 = vor.u32 %v1185, %v1186
        %v1188 = vshll.u32 2131351028, %v1179
        %v1189 = vshrl.u32 2102212464, %v1180
        %v1190 = vor.u32 %v1188, %v1189
        %v1191 = vshll.u32 2102212464, %v1179
        %v1192 = vshrl.u32 920167782, %v1180
        %v1193 = vor.u32 %v1191, %v1192
        %v1194 = vshll.u32 920167782, %v1179
        %v1195 = vshrl.u32 1326507024, %v1180
        %v1196 = vor.u32 %v1194, %v1195
        %vm1197 = vcmp.lt.s32.totalorder %v1178, 1
        %vm1198 = vcmp.lt.s32.totalorder %v1178, 2
        %vm1199 = vcmp.lt.s32.totalorder %v1178, 3
        %vm1200 = vcmp.lt.s32.totalorder %v1178, 4
        %v1201 = vsel %vm1197, %v1181, %v1184
        %v1202 = vsel %vm1200, %v1190, 2102212464
        %v1203 = vsel %vm1199, %v1187, %v1202
        %v1204 = vsel %vm1198, %v1201, %v1203
        %v1205 = vsel %vm1197, %v1184, %v1187
        %v1206 = vsel %vm1200, %v1193, 920167782
        %v1207 = vsel %vm1199, %v1190, %v1206
        %v1208 = vsel %vm1198, %v1205, %v1207
        %v1209 = vsel %vm1197, %v1187, %v1190
        %v1210 = vsel %vm1200, %v1196, 1326507024
        %v1211 = vsel %vm1199, %v1193, %v1210
        %v1212 = vsel %vm1198, %v1209, %v1211
        %v1213 = vshll.u32 %v1173, 8
        %v1214 = vmul.u32.u64.compose %v1213, %v1212
        %v1215 = vextract.low.u32 %v1214
        %v1216 = vextract.high.u32 %v1214
        %v1217 = vmul.u32.u64.compose %v1213, %v1208
        %v1218 = vextract.low.u32 %v1217
        %v1219 = vextract.high.u32 %v1217
        %v1220 = vmul.u32 %v1213, %v1204
        %v1221 = vadd.s32 %v1216, %v1218
        %vm1222 = vc.u32 %v1216, %v1218
        %v1223 = vadd.s32 %v1219, 1
        %v1224 = vsel %vm1222, %v1223, %v1219
        %v1225 = vadd.s32 %v1220, %v1224
        %v1226 = vadd.s32 %v1225, 536870912
        %v1227 = vshrl.u32 %v1226, 30
        %v1228 = vshll.u32 %v1227, 30
        %v1229 = vsub.s32 %v1225, %v1228
        %vm1230 = vcmp.lt.s32.totalorder %v1229, 0
        %v1231 = vsub.s32 0, %v1229
        %v1232 = vsel %vm1230, %v1231, %v1229
        %v1233 = vclz %v1232
        %v1234 = vsub.s32 %v1233, 2
        %vm1235 = vcmp.gt.s32.totalorder 0, %v1234
        %v1236 = vsel %vm1235, 0, %v1234
        %v1237 = vsub.s32 32, %v1236
        %v1238 = vshll.u32 %v1229, %v1236
        %v1239 = vshrl.u32 %v1221, %v1237
        %v1240 = vor.u32 %v1238, %v1239
        %v1241 = vsub.s32 4294967266, %v1236
        %v1242 = vadd.s32 %v1241, 127
        %v1243 = vshll.u32 %v1242, 23
        %v1244 = vor.u32 4788187, %v1243
        %v1245 = vand.u32 2147483647, %v1244
        %v1247 = vcvt.s32.f32 %v1240
        %v1248 = vmul.f32 %v1247, %v1245
        %v1249 = vxor.u32 %v1248, 2147483648
        %v1250 = vsel %vm1167, %v1249, %v1248
        %v1251 = vsub.s32 4, %v1227
        %v1252 = vsel %vm1167, %v1251, %v1227
        %v1253 = vsel %vm1166, %v1162, %v1250
        %v1254 = vsel %vm1166, 0, %v1252
        %v1255 = vcosq.f32.pop %v1253
        %v1256 = vsinq.f32.pop %v1253
        %vm1257 = vweird.f32 %v1162
        %v1258 = vand.u32 %v1254, 3
        %vm1259 = vcmp.lt.s32.totalorder %v1258, 2
        %vm1260 = vcmp.eq.s32.totalorder %v1258, 0
        %v1261 = vxor.u32 %v1256, 2147483648
        %v1262 = vsel %vm1260, %v1255, %v1261
        %vm1263 = vcmp.eq.s32.totalorder %v1258, 2
        %v1264 = vxor.u32 %v1255, 2147483648
        %v1265 = vsel %vm1263, %v1264, %v1256
        %v1266 = vsel %vm1259, %v1262, %v1265
        %v1267 = vsel %vm1257, nan, %v1266
        %v1268 = vand.u32 2147483647, %v1163
        %vm1269 = vcmp.le.f32.partialorder %v1268, 0.7853982
        %vm1270 = vcmp.lt.s32.totalorder %v1163, 0
        %v1271 = vand.u32 %v1163, 2139095040
        %v1272 = vshrl.u32 %v1271, 23
        %v1273 = vsub.s32 %v1272, 127
        %v1274 = vand.u32 2147483647, %v1163
        %v1275 = vand.u32 %v1274, 8388607
        %v1276 = vor.u32 %v1275, 8388608
        %v1277 = vsub.s32 0, %v1276
        %v1278 = vadd.s32 %v1273, 1
        %vm1279 = vcmp.gt.s32.totalorder %v1278, 0
        %v1280 = vsel %vm1279, %v1278, 0
        %v1281 = vshrl.u32 %v1280, 5
        %v1282 = vand.u32 %v1280, 31
        %v1283 = vsub.s32 32, %v1282
        %v1284 = vshrl.u32 683565275, %v1283
        %v1285 = vshll.u32 683565275, %v1282
        %v1286 = vshrl.u32 2475754826, %v1283
        %v1287 = vor.u32 %v1285, %v1286
        %v1288 = vshll.u32 2475754826, %v1282
        %v1289 = vshrl.u32 2131351028, %v1283
        %v1290 = vor.u32 %v1288, %v1289
        %v1291 = vshll.u32 2131351028, %v1282
        %v1292 = vshrl.u32 2102212464, %v1283
        %v1293 = vor.u32 %v1291, %v1292
        %v1294 = vshll.u32 2102212464, %v1282
        %v1295 = vshrl.u32 920167782, %v1283
        %v1296 = vor.u32 %v1294, %v1295
        %v1297 = vshll.u32 920167782, %v1282
        %v1298 = vshrl.u32 1326507024, %v1283
        %v1299 = vor.u32 %v1297, %v1298
        %vm1300 = vcmp.lt.s32.totalorder %v1281, 1
        %vm1301 = vcmp.lt.s32.totalorder %v1281, 2
        %vm1302 = vcmp.lt.s32.totalorder %v1281, 3
        %vm1303 = vcmp.lt.s32.totalorder %v1281, 4
        %v1304 = vsel %vm1300, %v1284, %v1287
        %v1305 = vsel %vm1303, %v1293, 2102212464
        %v1306 = vsel %vm1302, %v1290, %v1305
        %v1307 = vsel %vm1301, %v1304, %v1306
        %v1308 = vsel %vm1300, %v1287, %v1290
        %v1309 = vsel %vm1303, %v1296, 920167782
        %v1310 = vsel %vm1302, %v1293, %v1309
        %v1311 = vsel %vm1301, %v1308, %v1310
        %v1312 = vsel %vm1300, %v1290, %v1293
        %v1313 = vsel %vm1303, %v1299, 1326507024
        %v1314 = vsel %vm1302, %v1296, %v1313
        %v1315 = vsel %vm1301, %v1312, %v1314
        %v1316 = vshll.u32 %v1276, 8
        %v1317 = vmul.u32.u64.compose %v1316, %v1315
        %v1318 = vextract.low.u32 %v1317
        %v1319 = vextract.high.u32 %v1317
        %v1320 = vmul.u32.u64.compose %v1316, %v1311
        %v1321 = vextract.low.u32 %v1320
        %v1322 = vextract.high.u32 %v1320
        %v1323 = vmul.u32 %v1316, %v1307
        %v1324 = vadd.s32 %v1319, %v1321
        %vm1325 = vc.u32 %v1319, %v1321
        %v1326 = vadd.s32 %v1322, 1
        %v1327 = vsel %vm1325, %v1326, %v1322
        %v1328 = vadd.s32 %v1323, %v1327
        %v1329 = vadd.s32 %v1328, 536870912
        %v1330 = vshrl.u32 %v1329, 30
        %v1331 = vshll.u32 %v1330, 30
        %v1332 = vsub.s32 %v1328, %v1331
        %vm1333 = vcmp.lt.s32.totalorder %v1332, 0
        %v1334 = vsub.s32 0, %v1332
        %v1335 = vsel %vm1333, %v1334, %v1332
        %v1336 = vclz %v1335
        %v1337 = vsub.s32 %v1336, 2
        %vm1338 = vcmp.gt.s32.totalorder 0, %v1337
        %v1339 = vsel %vm1338, 0, %v1337
        %v1340 = vsub.s32 32, %v1339
        %v1341 = vshll.u32 %v1332, %v1339
        %v1342 = vshrl.u32 %v1324, %v1340
        %v1343 = vor.u32 %v1341, %v1342
        %v1344 = vsub.s32 4294967266, %v1339
        %v1345 = vadd.s32 %v1344, 127
        %v1346 = vshll.u32 %v1345, 23
        %v1347 = vor.u32 4788187, %v1346
        %v1348 = vand.u32 2147483647, %v1347
        %v1350 = vcvt.s32.f32 %v1343
        %v1351 = vmul.f32 %v1350, %v1348
        %v1352 = vxor.u32 %v1351, 2147483648
        %v1353 = vsel %vm1270, %v1352, %v1351
        %v1354 = vsub.s32 4, %v1330
        %v1355 = vsel %vm1270, %v1354, %v1330
        %v1356 = vsel %vm1269, %v1163, %v1353
        %v1357 = vsel %vm1269, 0, %v1355
        %v1358 = vcosq.f32.pop %v1356
        %v1359 = vsinq.f32.pop %v1356
        %vm1360 = vweird.f32 %v1163
        %v1361 = vand.u32 %v1357, 3
        %vm1362 = vcmp.lt.s32.totalorder %v1361, 2
        %vm1363 = vcmp.eq.s32.totalorder %v1361, 0
        %v1364 = vxor.u32 %v1359, 2147483648
        %v1365 = vsel %vm1363, %v1358, %v1364
        %vm1366 = vcmp.eq.s32.totalorder %v1361, 2
        %v1367 = vxor.u32 %v1358, 2147483648
        %v1368 = vsel %vm1366, %v1367, %v1359
        %v1369 = vsel %vm1362, %v1365, %v1368
        %v1370 = vsel %vm1360, nan, %v1369
        %v1371 = vand.u32 2147483647, %v1164
        %vm1372 = vcmp.le.f32.partialorder %v1371, 0.7853982
        %vm1373 = vcmp.lt.s32.totalorder %v1164, 0
        %v1374 = vand.u32 %v1164, 2139095040
        %v1375 = vshrl.u32 %v1374, 23
        %v1376 = vsub.s32 %v1375, 127
        %v1377 = vand.u32 2147483647, %v1164
        %v1378 = vand.u32 %v1377, 8388607
        %v1379 = vor.u32 %v1378, 8388608
        %v1380 = vsub.s32 0, %v1379
        %v1381 = vadd.s32 %v1376, 1
        %vm1382 = vcmp.gt.s32.totalorder %v1381, 0
        %v1383 = vsel %vm1382, %v1381, 0
        %v1384 = vshrl.u32 %v1383, 5
        %v1385 = vand.u32 %v1383, 31
        %v1386 = vsub.s32 32, %v1385
        %v1387 = vshrl.u32 683565275, %v1386
        %v1388 = vshll.u32 683565275, %v1385
        %v1389 = vshrl.u32 2475754826, %v1386
        %v1390 = vor.u32 %v1388, %v1389
        %v1391 = vshll.u32 2475754826, %v1385
        %v1392 = vshrl.u32 2131351028, %v1386
        %v1393 = vor.u32 %v1391, %v1392
        %v1394 = vshll.u32 2131351028, %v1385
        %v1395 = vshrl.u32 2102212464, %v1386
        %v1396 = vor.u32 %v1394, %v1395
        %v1397 = vshll.u32 2102212464, %v1385
        %v1398 = vshrl.u32 920167782, %v1386
        %v1399 = vor.u32 %v1397, %v1398
        %v1400 = vshll.u32 920167782, %v1385
        %v1401 = vshrl.u32 1326507024, %v1386
        %v1402 = vor.u32 %v1400, %v1401
        %vm1403 = vcmp.lt.s32.totalorder %v1384, 1
        %vm1404 = vcmp.lt.s32.totalorder %v1384, 2
        %vm1405 = vcmp.lt.s32.totalorder %v1384, 3
        %vm1406 = vcmp.lt.s32.totalorder %v1384, 4
        %v1407 = vsel %vm1403, %v1387, %v1390
        %v1408 = vsel %vm1406, %v1396, 2102212464
        %v1409 = vsel %vm1405, %v1393, %v1408
        %v1410 = vsel %vm1404, %v1407, %v1409
        %v1411 = vsel %vm1403, %v1390, %v1393
        %v1412 = vsel %vm1406, %v1399, 920167782
        %v1413 = vsel %vm1405, %v1396, %v1412
        %v1414 = vsel %vm1404, %v1411, %v1413
        %v1415 = vsel %vm1403, %v1393, %v1396
        %v1416 = vsel %vm1406, %v1402, 1326507024
        %v1417 = vsel %vm1405, %v1399, %v1416
        %v1418 = vsel %vm1404, %v1415, %v1417
        %v1419 = vshll.u32 %v1379, 8
        %v1420 = vmul.u32.u64.compose %v1419, %v1418
        %v1421 = vextract.low.u32 %v1420
        %v1422 = vextract.high.u32 %v1420
        %v1423 = vmul.u32.u64.compose %v1419, %v1414
        %v1424 = vextract.low.u32 %v1423
        %v1425 = vextract.high.u32 %v1423
        %v1426 = vmul.u32 %v1419, %v1410
        %v1427 = vadd.s32 %v1422, %v1424
        %vm1428 = vc.u32 %v1422, %v1424
        %v1429 = vadd.s32 %v1425, 1
        %v1430 = vsel %vm1428, %v1429, %v1425
        %v1431 = vadd.s32 %v1426, %v1430
        %v1432 = vadd.s32 %v1431, 536870912
        %v1433 = vshrl.u32 %v1432, 30
        %v1434 = vshll.u32 %v1433, 30
        %v1435 = vsub.s32 %v1431, %v1434
        %vm1436 = vcmp.lt.s32.totalorder %v1435, 0
        %v1437 = vsub.s32 0, %v1435
        %v1438 = vsel %vm1436, %v1437, %v1435
        %v1439 = vclz %v1438
        %v1440 = vsub.s32 %v1439, 2
        %vm1441 = vcmp.gt.s32.totalorder 0, %v1440
        %v1442 = vsel %vm1441, 0, %v1440
        %v1443 = vsub.s32 32, %v1442
        %v1444 = vshll.u32 %v1435, %v1442
        %v1445 = vshrl.u32 %v1427, %v1443
        %v1446 = vor.u32 %v1444, %v1445
        %v1447 = vsub.s32 4294967266, %v1442
        %v1448 = vadd.s32 %v1447, 127
        %v1449 = vshll.u32 %v1448, 23
        %v1450 = vor.u32 4788187, %v1449
        %v1451 = vand.u32 2147483647, %v1450
        %v1453 = vcvt.s32.f32 %v1446
        %v1454 = vmul.f32 %v1453, %v1451
        %v1455 = vxor.u32 %v1454, 2147483648
        %v1456 = vsel %vm1373, %v1455, %v1454
        %v1457 = vsub.s32 4, %v1433
        %v1458 = vsel %vm1373, %v1457, %v1433
        %v1459 = vsel %vm1372, %v1164, %v1456
        %v1460 = vsel %vm1372, 0, %v1458
        %v1461 = vcosq.f32.pop %v1459
        %v1462 = vsinq.f32.pop %v1459
        %vm1463 = vweird.f32 %v1164
        %v1464 = vand.u32 %v1460, 3
        %vm1465 = vcmp.lt.s32.totalorder %v1464, 2
        %vm1466 = vcmp.eq.s32.totalorder %v1464, 0
        %v1467 = vxor.u32 %v1462, 2147483648
        %v1468 = vsel %vm1466, %v1461, %v1467
        %vm1469 = vcmp.eq.s32.totalorder %v1464, 2
        %v1470 = vxor.u32 %v1461, 2147483648
        %v1471 = vsel %vm1469, %v1470, %v1462
        %v1472 = vsel %vm1465, %v1468, %v1471
        %v1473 = vsel %vm1463, nan, %v1472
        %1474 = vst [vmem:[#allocation2 + $0xc0] sm:$0xff] %v1267
        %1475 = vst [vmem:[#allocation2 + $0xc8] sm:$0xff] %v1370
        %1476 = vst [vmem:[#allocation2 + $0xd0] sm:$0xff] %v1473
        %v1477 = vld [vmem:[%s5] sm:$0xff]
        %v1478 = vld [vmem:[%s5 + $0x8] sm:$0xff]
        %v1479 = vld [vmem:[%s5 + $0x10] sm:$0xff]
        %v1480 = vld [vmem:[%s5 + $0x18] sm:$0xff]
        %v1481 = vld [vmem:[%s5 + $0x20] sm:$0xff]
        %v1482 = vld [vmem:[%s5 + $0x28] sm:$0xff]
        %v1483 = vld [vmem:[%s5 + $0x30] sm:$0xff]
        %v1484 = vld [vmem:[%s5 + $0x38] sm:$0xff]
        %v1485 = vld [vmem:[#allocation2] sm:$0xff]
        %v1486 = vld [vmem:[#allocation2 + $0x8] sm:$0xff]
        %v1487 = vld [vmem:[#allocation2 + $0x10] sm:$0xff]
        %v1488 = vld [vmem:[#allocation2 + $0x18] sm:$0xff]
        %v1489 = vld [vmem:[#allocation2 + $0x20] sm:$0xff]
        %v1490 = vld [vmem:[#allocation2 + $0x28] sm:$0xff]
        %v1491 = vld [vmem:[#allocation2 + $0x30] sm:$0xff]
        %v1492 = vld [vmem:[#allocation2 + $0x38] sm:$0xff]
        %v1493 = vld [vmem:[#allocation2 + $0x40] sm:$0xff]
        %v1494 = vld [vmem:[#allocation2 + $0x48] sm:$0xff]
        %v1495 = vld [vmem:[#allocation2 + $0x50] sm:$0xff]
        %v1496 = vld [vmem:[#allocation2 + $0x58] sm:$0xff]
        %v1497 = vld [vmem:[#allocation2 + $0x60] sm:$0xff]
        %v1498 = vld [vmem:[#allocation2 + $0x68] sm:$0xff]
        %v1499 = vld [vmem:[#allocation2 + $0x70] sm:$0xff]
        %v1500 = vld [vmem:[#allocation2 + $0x78] sm:$0xff]
        %v1501 = vld [vmem:[#allocation2 + $0x80] sm:$0xff]
        %v1502 = vld [vmem:[#allocation2 + $0x88] sm:$0xff]
        %v1503 = vld [vmem:[#allocation2 + $0x90] sm:$0xff]
        %v1504 = vld [vmem:[#allocation2 + $0x98] sm:$0xff]
        %v1505 = vld [vmem:[#allocation2 + $0xa0] sm:$0xff]
        %v1506 = vld [vmem:[#allocation2 + $0xa8] sm:$0xff]
        %v1507 = vld [vmem:[#allocation2 + $0xb0] sm:$0xff]
        %v1508 = vld [vmem:[#allocation2 + $0xb8] sm:$0xff]
        %v1509 = vld [vmem:[#allocation2 + $0xc0] sm:$0xff]
        %v1510 = vld [vmem:[#allocation2 + $0xc8] sm:$0xff]
        %v1511 = vld [vmem:[#allocation2 + $0xd0] sm:$0xff]
        %v1512 = vld [vmem:[%s6] sm:$0xff]
        %v1513 = vld [vmem:[%s6 + $0x8] sm:$0xff]
        %v1514 = vld [vmem:[%s6 + $0x10] sm:$0xff]
        %v1515 = vld [vmem:[%s6 + $0x18] sm:$0xff]
        %1517 = vset.pattern.permute.xlu0 0
        %1518 = vperm.xlu0 %1517, %v1512
        %v1519 = vpop.permute.xlu0 %1518
        %1522 = vset.pattern.permute.xlu0 0
        %1523 = vperm.xlu0 %1522, %v1513
        %v1524 = vpop.permute.xlu0 %1523
        %1527 = vset.pattern.permute.xlu0 0
        %1528 = vperm.xlu0 %1527, %v1514
        %v1529 = vpop.permute.xlu0 %1528
        %1532 = vset.pattern.permute.xlu0 0
        %1533 = vperm.xlu0 %1532, %v1515
        %v1534 = vpop.permute.xlu0 %1533
        %vm1536 = vcmask 719872
        %v1538 = vsel %vm1536, %v1478, 0
        %v1541 = vsel %vm1536, %v1480, 0
        %v1544 = vsel %vm1536, %v1482, 0
        %v1547 = vsel %vm1536, %v1484, 0
        %1549 = vmatprep.subr.mxu0 0.0
        %1550 = vmatpush1.msra.mxu0 %v1485
        %1551 = vmatprep.subr.mxu0 0.0
        %1552 = vmatpush1.msra.mxu0 %v1486
        %1553 = vmatprep.subr.mxu0 0.0
        %1554 = vmatpush1.msra.mxu0 %v1487
        %1555 = vmatprep.subr.mxu0 0.0
        %1556 = vmatpush1.msra.mxu0 %v1488
        %1557 = vmatprep.subr.mxu0 0.0
        %1558 = vmatpush1.msra.mxu0 %v1489
        %1559 = vmatprep.subr.mxu0 0.0
        %1560 = vmatpush1.msra.mxu0 %v1490
        %1561 = vmatprep.subr.mxu0 0.0
        %1562 = vmatpush1.msra.mxu0 %v1491
        %1563 = vmatprep.subr.mxu0 0.0
        %1564 = vmatpush1.msra.mxu0 %v1492
        %1565 = vmatprep.subr.mxu0 0.0
        %1566 = vmatpush1.msra.mxu0 %v1493
        %1567 = vmatprep.subr.mxu0 0.0
        %1568 = vmatpush1.msra.mxu0 %v1494
        %1569 = vmatprep.subr.mxu0 0.0
        %1570 = vmatpush1.msra.mxu0 %v1495
        %1571 = vmatprep.subr.mxu0 0.0
        %1572 = vmatpush1.msra.mxu0 %v1496
        %1573 = vmatprep.subr.mxu0 0.0
        %1574 = vmatpush1.msra.mxu0 %v1497
        %1575 = vmatprep.subr.mxu0 0.0
        %1576 = vmatpush1.msra.mxu0 %v1498
        %1577 = vmatprep.subr.mxu0 0.0
        %1578 = vmatpush1.msra.mxu0 %v1499
        %1579 = vmatprep.subr.mxu0 0.0
        %1580 = vmatpush1.msra.mxu0 %v1500
        %1581 = vmatprep.subr.mxu0 0.0
        %1582 = vmatpush1.msra.mxu0 %v1501
        %1583 = vmatprep.subr.mxu0 0.0
        %1584 = vmatpush1.msra.mxu0 %v1502
        %1585 = vmatprep.subr.mxu0 0.0
        %1586 = vmatpush1.msra.mxu0 %v1503
        %1587 = vmatprep.subr.mxu0 0.0
        %1588 = vmatpush1.msra.mxu0 %v1504
        %1589 = vmatprep.subr.mxu0 0.0
        %1590 = vmatpush1.msra.mxu0 %v1505
        %1591 = vmatprep.subr.mxu0 0.0
        %1592 = vmatpush1.msra.mxu0 %v1506
        %1593 = vmatprep.subr.mxu0 0.0
        %1594 = vmatpush1.msra.mxu0 %v1507
        %1595 = vmatprep.subr.mxu0 0.0
        %1596 = vmatpush1.msra.mxu0 %v1508
        %1597 = vmatprep.subr.mxu0 0.0
        %1598 = vmatpush1.msra.mxu0 %v1509
        %1599 = vmatprep.subr.mxu0 0.0
        %1600 = vmatpush1.msra.mxu0 %v1510
        %1601 = vmatprep.subr.mxu0 0.0
        %1602 = vmatpush1.msra.mxu0 %v1511
        %1603 = vmatprep.subr.mxu0 0.0
        %1604 = vmatpush1.msra.mxu0 0.0
        %1605 = vmatprep.subr.mxu0 0.0
        %1606 = vmatpush1.msra.mxu0 0.0
        %1607 = vmatprep.subr.mxu0 0.0
        %1608 = vmatpush1.msra.mxu0 0.0
        %1609 = vmatprep.subr.mxu0 0.0
        %1610 = vmatpush1.msra.mxu0 0.0
        %1611 = vmatprep.subr.mxu0 0.0
        %1612 = vmatpush1.msra.mxu0 0.0
        %1613 = vmatprep.mubr.f32.mxu0 %v1538
        %1614 = vmatmul.mubr.f32.gmra.mrb[0].mxu0 %v1477
        %v1615 = vpop.f32.mrb[0].mxu0
        %v1616 = vadd.f32 %v1519, %v1615
        %v1617 = vpop.f32.mrb[0].mxu0
        %1618 = vmatprep.mubr.f32.mxu0 %v1541
        %1619 = vmatmul.mubr.f32.gmra.mrb[0].mxu0 %v1479
        %v1620 = vpop.f32.mrb[0].mxu0
        %v1621 = vadd.f32 %v1524, %v1620
        %v1622 = vpop.f32.mrb[0].mxu0
        %1623 = vmatprep.mubr.f32.mxu0 %v1544
        %1624 = vmatmul.mubr.f32.gmra.mrb[0].mxu0 %v1481
        %v1625 = vpop.f32.mrb[0].mxu0
        %v1626 = vadd.f32 %v1529, %v1625
        %v1627 = vpop.f32.mrb[0].mxu0
        %1628 = vmatprep.mubr.f32.mxu0 %v1547
        %1629 = vmatmul.mubr.f32.gmra.mrb[0].mxu0 %v1483
        %v1630 = vpop.f32.mrb[0].mxu0
        %v1631 = vadd.f32 %v1534, %v1630
        %v1632 = vpop.f32.mrb[0].mxu0
        %1633 = vdwg.mxu0
        %1634 = vst [vmem:[%s272] sm:$0xff] %v1616
        %1635 = vst [vmem:[%s272 + $0x8] sm:$0xff] %v1621
        %1636 = vst [vmem:[%s272 + $0x10] sm:$0xff] %v1626
        %1637 = vst [vmem:[%s272 + $0x18] sm:$0xff] %v1631
        %s1638 = sand.u32 %s181, 1
        %s1639 = scalar_lea.sflag [#allocation4], %s1638
        %s1640 = sand.u32 %s181, 1
        %s1641 = smul.addr %s1640, 32
        %s1642 = scalar_lea.vmem [#allocation3], %s1641
        // Predicated region
        $region49: #{tpu_custom_call.1} parent=47 // pred_check
          %p1643 = pneg %p191
        $region50: #{tpu_custom_call.1} parent=47 // pred_check_branch
          %1645 = sbr.rel (%p1643) target = $region52
        $region51: #{tpu_custom_call.1} parent=47 // pred_region
          %s1647 = ssub.s32 512, 512
          %1648 = vsyncadd %s1639, %s1647
          %s1649 = smul.addr %s21, 128
          %s1650 = scalar_lea.hbm %s7, %s1649
          %s1651 = sshll.u32 %s1642, 4
          %s1652 = int_to_ptr.vmem [resolvable:$true] %s1651
          %1657 = dma.vmem_to_hbm [thread:$0]  %s1652, 512, %s1650, %s1639, 128, 256, 8
        $region52: #{tpu_custom_call.1} parent=47 // pred_fallthru
          _
      $region48: #{tpu_custom_call.1} parent=5 // pred_fallthru
        _
      %p1658 = scmp.le.s32.totalorder 2, %s16
      // Predicated region
      $region53: #{tpu_custom_call.1} parent=5 // pred_check
        %p1659 = pneg %p1658
      $region54: #{tpu_custom_call.1} parent=5 // pred_check_branch
        %1661 = sbr.rel (%p1659) target = $region56
      $region55: #{tpu_custom_call.1} parent=5 // pred_region
        %s1662 = ssub.s32 %s16, 2
        // Predicated region
        $region57: #{tpu_custom_call.1} parent=55 // pred_check
          %p1663 = pneg %p197
        $region58: #{tpu_custom_call.1} parent=55 // pred_check_branch
          %1665 = sbr.rel (%p1663) target = $region60
        $region59: #{tpu_custom_call.1} parent=55 // pred_region
          %s1666 = sand.u32 %s182, 1
          %s1667 = scalar_lea.sflag [#allocation4], %s1666
          %s1668 = sand.u32 %s182, 1
          %s1669 = smul.addr %s1668, 32
          %s1670 = scalar_lea.vmem [#allocation3], %s1669
          %1671 = dma.done %s1667, 512
        $region60: #{tpu_custom_call.1} parent=55 // pred_fallthru
          _
      $region56: #{tpu_custom_call.1} parent=5 // pred_fallthru
        _
    $region6: #{tpu_custom_call.1} parent=1 // loop_footer
      %s20 = sadd.s32 1, %s16
    $region7: #{tpu_custom_call.1} parent=1 // loop_footer_branch
      %15 = sbr.rel target = $region3
    $region8: #{tpu_custom_call.1} parent=1 // loop_exit
      _
    %1672 = vsyncpa [#allocation4], 1
    %s1673 = scalar_lea.sflag [#allocation4], 1
    %1674 = vsyncpa %s1673, 1

</llo_original>
